<compile_context>
chip_gen: v7x
topology: tpu7x:2x2x1
jax: 0.10.0
libtpu: 0.0.40
codegen_flags: <defaults>
</compile_context>

<pallas_src>
import functools

import jax
import jax.numpy as jnp
import numpy as np
from jax.experimental import pallas as pl
from jax.experimental.pallas import tpu as pltpu

EPS = 1e-5


def _dense_block_kernel(x_ref, w_ref, p_ref, o_ref, buf_ref,
                        *, depth, H, WC, halo):
    """All `depth` layers for one batch element; activation resident in VMEM.

    x_ref  : (1, H, W*C)           input, channels fastest (lane-dense)
    w_ref  : (depth, 2, W*C, W*C)  banded conv weights, one per time tap
    p_ref  : (depth, 4, W*C)       bias / gamma / beta / alpha, tiled over W
    o_ref  : (1, H, W*C)           output
    buf_ref: (halo + H, W*C)       scratch; rows [0, halo) = causal zero pad
    """
    # Initialize: zero the causal halo, place the input in the interior.
    buf_ref[0:halo, :] = jnp.zeros((halo, WC), jnp.float32)
    buf_ref[halo:halo + H, :] = x_ref[0]

    for l in range(depth):                      # static, depth is tiny
        dil = 2 ** l
        r0 = halo - dil                         # time tap kh=0 (causal, dilated)

        # Dilated (2,3) conv + channel mix as two lane-dense matmuls.
        acc = jnp.dot(buf_ref[r0:r0 + H, :], w_ref[l, 0],
                      preferred_element_type=jnp.float32)
        acc = acc + jnp.dot(buf_ref[halo:halo + H, :], w_ref[l, 1],
                            preferred_element_type=jnp.float32)

        prm = p_ref[l]                          # (4, W*C)
        acc = acc + prm[0:1, :]                 # conv bias

        # InstantLayerNorm2d: normalize over (C, F) per time frame == per row.
        mean = jnp.mean(acc, axis=-1, keepdims=True)
        ctr = acc - mean
        var = jnp.mean(ctr * ctr, axis=-1, keepdims=True)
        y = ctr * jax.lax.rsqrt(var + EPS)
        y = y * prm[1:2, :] + prm[2:3, :]       # gamma, beta (per channel)

        # PReLU with per-channel slope.
        y = jnp.where(y > 0.0, y, prm[3:4, :] * y)

        # Feed the next layer; the zero halo rows are never overwritten.
        buf_ref[halo:halo + H, :] = y

    o_ref[0] = buf_ref[halo:halo + H, :]


@functools.partial(jax.jit, static_argnames=("depth",))
def dense_block(x_nchw, wbig, ptile, *, depth):
    """Full DenseBlock forward. Input/output are NCHW (like PyTorch)."""
    B, C, H, W = x_nchw.shape
    WC = W * C
    halo = 2 ** (depth - 1)

    # NCHW -> (B, H, W*C) with channels fastest (lane dimension).
    x2d = jnp.transpose(x_nchw, (0, 2, 3, 1)).reshape(B, H, WC)

    kernel = functools.partial(_dense_block_kernel,
                               depth=depth, H=H, WC=WC, halo=halo)

    out2d = pl.pallas_call(
        kernel,
        out_shape=jax.ShapeDtypeStruct((B, H, WC), jnp.float32),
        grid_spec=pltpu.PrefetchScalarGridSpec(
            num_scalar_prefetch=0,
            grid=(B,),
            in_specs=[
                pl.BlockSpec((1, H, WC), lambda b: (b, 0, 0)),
                pl.BlockSpec((depth, 2, WC, WC), lambda b: (0, 0, 0, 0)),
                pl.BlockSpec((depth, 4, WC), lambda b: (0, 0, 0)),
            ],
            out_specs=pl.BlockSpec((1, H, WC), lambda b: (b, 0, 0)),
            scratch_shapes=[pltpu.VMEM((halo + H, WC), jnp.float32)],
        ),
        compiler_params=pltpu.CompilerParams(
            dimension_semantics=("parallel",)),
    )(x2d, wbig, ptile)

    return jnp.transpose(out2d.reshape(B, H, W, C), (0, 3, 1, 2))


def init_params(key, depth, C, W):
    """Deterministic init mirroring the PyTorch module, plus packed TPU forms.

    Returns
      layers : list of per-layer dicts (w,b,gamma,beta,alpha) for the reference
      wbig   : (depth, 2, W*C, W*C) banded weights for the Pallas kernel
      ptile  : (depth, 4, W*C)      per-channel params tiled across frequency
    """
    WC = W * C
    k_bound = 1.0 / np.sqrt(C * 2 * 3)          # PyTorch Conv2d fan-in bound
    layers = []
    wbig = np.zeros((depth, 2, WC, WC), np.float32)
    ptile = np.zeros((depth, 4, WC), np.float32)

    for i in range(depth):
        key, kw_, kb_ = jax.random.split(key, 3)
        w = jax.random.uniform(kw_, (C, C, 2, 3), jnp.float32, -k_bound, k_bound)
        b = jax.random.uniform(kb_, (C,), jnp.float32, -k_bound, k_bound)
        gamma = jnp.ones((C,), jnp.float32)
        beta = jnp.zeros((C,), jnp.float32)
        alpha = jnp.full((C,), 0.25, jnp.float32)
        layers.append(dict(w=w, b=b, gamma=gamma, beta=beta, alpha=alpha))

        # Banded weight: out[t, wout*C + co] = sum_{wi, ci} x[t_kh, wi*C + ci]
        #                                      * wt[co, ci, kh, wi - wout + 1]
        # (freq left pad of 1 is absorbed by dropping out-of-range bands).
        wn = np.asarray(w)                      # (Cout, Cin, 2, 3)
        for kh in range(2):
            for wout in range(W):
                for kw in range(3):
                    wi = wout + kw - 1
                    if 0 <= wi < W:
                        wbig[i, kh,
                             wi * C:(wi + 1) * C,
                             wout * C:(wout + 1) * C] = wn[:, :, kh, kw].T

        ptile[i, 0] = np.tile(np.asarray(b), W)
        ptile[i, 1] = np.tile(np.asarray(gamma), W)
        ptile[i, 2] = np.tile(np.asarray(beta), W)
        ptile[i, 3] = np.tile(np.asarray(alpha), W)

    return layers, jnp.asarray(wbig), jnp.asarray(ptile)


def reference_dense_block(x_nchw, layers, depth):
    """Pure-JAX (XLA) reference for validation."""
    out = x_nchw
    for i in range(depth):
        dil = 2 ** i
        p = layers[i]
        xp = jnp.pad(out, ((0, 0), (0, 0), (dil, 0), (1, 1)))
        y = jax.lax.conv_general_dilated(
            xp, p["w"], window_strides=(1, 1), padding="VALID",
            rhs_dilation=(dil, 1),
            dimension_numbers=("NCHW", "OIHW", "NCHW"),
            preferred_element_type=jnp.float32)
        y = y + p["b"][None, :, None, None]
        mean = jnp.mean(y, axis=(1, 3), keepdims=True)
        var = jnp.mean((y - mean) ** 2, axis=(1, 3), keepdims=True)
        y = (y - mean) * jax.lax.rsqrt(var + EPS)
        y = y * p["gamma"][None, :, None, None] + p["beta"][None, :, None, None]
        out = jnp.where(y > 0.0, y, p["alpha"][None, :, None, None] * y)
    return out


if __name__ == "__main__":
    depth = 5
    B, C, H, W = 2, 16, 16, 16   # (batch, channels, time, freq) — small shapes

    key = jax.random.PRNGKey(0)
    key, kx = jax.random.split(key)
    x = jax.random.normal(kx, (B, C, H, W), jnp.float32)
    layers, wbig, ptile = init_params(key, depth, C, W)

    out = jax.block_until_ready(dense_block(x, wbig, ptile, depth=depth))
    assert out.shape == (B, C, H, W)

    ref = jax.block_until_ready(reference_dense_block(x, layers, depth))
    np.testing.assert_allclose(np.asarray(out), np.asarray(ref),
                               rtol=1e-2, atol=1e-2)

    print("KERNEL_OK")
</pallas_src>

<mosaic_0001>
module attributes {stable_mosaic.version = 11 : i64} {
  func.func @_dense_block_kernel(%arg0: i32, %arg1: memref<1x16x256xf32, #tpu.memory_space<vmem>>, %arg2: memref<5x2x256x256xf32, #tpu.memory_space<vmem>>, %arg3: memref<5x4x256xf32, #tpu.memory_space<vmem>>, %arg4: memref<1x16x256xf32, #tpu.memory_space<vmem>>, %arg5: memref<32x256xf32, #tpu.memory_space<vmem>>) attributes {dimension_semantics = [#tpu.dimension_semantics<parallel>], iteration_bounds = array<i64: 2>, scalar_prefetch = 0 : i64, scratch_operands = 1 : i64, tpu.core_type = #tpu.core_type<tc>, window_params = [{transform_indices = @transform_0, window_bounds = array<i64: 1, 16, 256>}, {pipeline_mode = #tpu.pipeline_mode<synchronous>, transform_indices = @transform_1, window_bounds = array<i64: 5, 2, 256, 256>}, {pipeline_mode = #tpu.pipeline_mode<synchronous>, transform_indices = @transform_2, window_bounds = array<i64: 5, 4, 256>}, {transform_indices = @transform_3, window_bounds = array<i64: 1, 16, 256>}]} {
    %cst = arith.constant 0.000000e+00 : f32
    %0 = vector.broadcast %cst : f32 to vector<16x256xf32>
    %c0 = arith.constant 0 : index
    %c0_0 = arith.constant 0 : index
    %1 = vector.load %arg5[%c0, %c0_0] : memref<32x256xf32, #tpu.memory_space<vmem>>, vector<16x256xf32>
    tpu.vector_store %arg5[%c0, %c0_0], %0 {strides = array<i32>} : memref<32x256xf32, #tpu.memory_space<vmem>>, vector<16x256xf32>,
    %c0_1 = arith.constant 0 : index
    %c0_2 = arith.constant 0 : index
    %c0_3 = arith.constant 0 : index
    %2 = vector.load %arg1[%c0_1, %c0_2, %c0_3] : memref<1x16x256xf32, #tpu.memory_space<vmem>>, vector<1x16x256xf32>
    %3 = vector.shape_cast %2 : vector<1x16x256xf32> to vector<16x256xf32>
    %c16 = arith.constant 16 : index
    %c0_4 = arith.constant 0 : index
    %4 = vector.load %arg5[%c16, %c0_4] : memref<32x256xf32, #tpu.memory_space<vmem>>, vector<16x256xf32>
    tpu.vector_store %arg5[%c16, %c0_4], %3 {strides = array<i32>} : memref<32x256xf32, #tpu.memory_space<vmem>>, vector<16x256xf32>,
    %c15 = arith.constant 15 : index
    %c0_5 = arith.constant 0 : index
    %5 = vector.load %arg5[%c15, %c0_5] : memref<32x256xf32, #tpu.memory_space<vmem>>, vector<16x256xf32>
    %c0_6 = arith.constant 0 : index
    %c0_7 = arith.constant 0 : index
    %c0_8 = arith.constant 0 : index
    %c0_9 = arith.constant 0 : index
    %6 = vector.load %arg2[%c0_6, %c0_7, %c0_8, %c0_9] : memref<5x2x256x256xf32, #tpu.memory_space<vmem>>, vector<1x1x256x256xf32>
    %7 = vector.shape_cast %6 : vector<1x1x256x256xf32> to vector<256x256xf32>
    %cst_10 = arith.constant dense<0.000000e+00> : vector<16x256xf32>
    %8 = tpu.matmul %5, %7, %cst_10 {dimension_numbers = #tpu.dot_dimension_numbers<[1], [0], [0], [1], [0, 0, 1, 1], [], []>} : vector<16x256xf32>, vector<256x256xf32>, vector<16x256xf32> -> vector<16x256xf32>
    %c16_11 = arith.constant 16 : index
    %c0_12 = arith.constant 0 : index
    %9 = vector.load %arg5[%c16_11, %c0_12] : memref<32x256xf32, #tpu.memory_space<vmem>>, vector<16x256xf32>
    %c0_13 = arith.constant 0 : index
    %c1 = arith.constant 1 : index
    %c0_14 = arith.constant 0 : index
    %c0_15 = arith.constant 0 : index
    %10 = vector.load %arg2[%c0_13, %c1, %c0_14, %c0_15] : memref<5x2x256x256xf32, #tpu.memory_space<vmem>>, vector<1x1x256x256xf32>
    %11 = vector.shape_cast %10 : vector<1x1x256x256xf32> to vector<256x256xf32>
    %cst_16 = arith.constant dense<0.000000e+00> : vector<16x256xf32>
    %12 = tpu.matmul %9, %11, %cst_16 {dimension_numbers = #tpu.dot_dimension_numbers<[1], [0], [0], [1], [0, 0, 1, 1], [], []>} : vector<16x256xf32>, vector<256x256xf32>, vector<16x256xf32> -> vector<16x256xf32>
    %13 = arith.addf %8, %12 : vector<16x256xf32>
    %c0_17 = arith.constant 0 : index
    %c0_18 = arith.constant 0 : index
    %c0_19 = arith.constant 0 : index
    %14 = vector.load %arg3[%c0_17, %c0_18, %c0_19] : memref<5x4x256xf32, #tpu.memory_space<vmem>>, vector<1x4x256xf32>
    %15 = vector.shape_cast %14 : vector<1x4x256xf32> to vector<4x256xf32>
    %16 = vector.extract_strided_slice %15 {offsets = [0, 0], sizes = [1, 256], strides = [1, 1]} : vector<4x256xf32> to vector<1x256xf32>
    %17 = vector.broadcast %16 : vector<1x256xf32> to vector<16x256xf32>
    %18 = arith.addf %13, %17 : vector<16x256xf32>
    %cst_20 = arith.constant dense<0.000000e+00> : vector<16xf32>
    %19 = vector.multi_reduction <add>, %18, %cst_20 [1] : vector<16x256xf32> to vector<16xf32>
    %20 = vector.shape_cast %19 : vector<16xf32> to vector<16x1xf32>
    %cst_21 = arith.constant 2.560000e+02 : f32
    %21 = vector.broadcast %cst_21 : f32 to vector<16x1xf32>
    %22 = arith.divf %20, %21 : vector<16x1xf32>
    %23 = vector.broadcast %22 : vector<16x1xf32> to vector<16x256xf32>
    %24 = arith.subf %18, %23 : vector<16x256xf32>
    %25 = arith.mulf %24, %24 : vector<16x256xf32>
    %cst_22 = arith.constant dense<0.000000e+00> : vector<16xf32>
    %26 = vector.multi_reduction <add>, %25, %cst_22 [1] : vector<16x256xf32> to vector<16xf32>
    %27 = vector.shape_cast %26 : vector<16xf32> to vector<16x1xf32>
    %cst_23 = arith.constant 2.560000e+02 : f32
    %28 = vector.broadcast %cst_23 : f32 to vector<16x1xf32>
    %29 = arith.divf %27, %28 : vector<16x1xf32>
    %cst_24 = arith.constant 9.99999974E-6 : f32
    %30 = vector.broadcast %cst_24 : f32 to vector<16x1xf32>
    %31 = arith.addf %29, %30 : vector<16x1xf32>
    %32 = math.rsqrt %31 : vector<16x1xf32>
    %33 = vector.broadcast %32 : vector<16x1xf32> to vector<16x256xf32>
    %34 = arith.mulf %24, %33 : vector<16x256xf32>
    %35 = vector.extract_strided_slice %15 {offsets = [1, 0], sizes = [1, 256], strides = [1, 1]} : vector<4x256xf32> to vector<1x256xf32>
    %36 = vector.broadcast %35 : vector<1x256xf32> to vector<16x256xf32>
    %37 = arith.mulf %34, %36 : vector<16x256xf32>
    %38 = vector.extract_strided_slice %15 {offsets = [2, 0], sizes = [1, 256], strides = [1, 1]} : vector<4x256xf32> to vector<1x256xf32>
    %39 = vector.broadcast %38 : vector<1x256xf32> to vector<16x256xf32>
    %40 = arith.addf %37, %39 : vector<16x256xf32>
    %cst_25 = arith.constant 0.000000e+00 : f32
    %41 = vector.broadcast %cst_25 : f32 to vector<16x256xf32>
    %42 = arith.cmpf ogt, %40, %41 : vector<16x256xf32>
    %43 = vector.extract_strided_slice %15 {offsets = [3, 0], sizes = [1, 256], strides = [1, 1]} : vector<4x256xf32> to vector<1x256xf32>
    %44 = vector.broadcast %43 : vector<1x256xf32> to vector<16x256xf32>
    %45 = arith.mulf %44, %40 : vector<16x256xf32>
    %46 = arith.select %42, %40, %45 : vector<16x256xi1>, vector<16x256xf32>
    %c16_26 = arith.constant 16 : index
    %c0_27 = arith.constant 0 : index
    %47 = vector.load %arg5[%c16_26, %c0_27] : memref<32x256xf32, #tpu.memory_space<vmem>>, vector<16x256xf32>
    tpu.vector_store %arg5[%c16_26, %c0_27], %46 {strides = array<i32>} : memref<32x256xf32, #tpu.memory_space<vmem>>, vector<16x256xf32>,
    %c14 = arith.constant 14 : index
    %c0_28 = arith.constant 0 : index
    %48 = vector.load %arg5[%c14, %c0_28] : memref<32x256xf32, #tpu.memory_space<vmem>>, vector<16x256xf32>
    %c1_29 = arith.constant 1 : index
    %c0_30 = arith.constant 0 : index
    %c0_31 = arith.constant 0 : index
    %c0_32 = arith.constant 0 : index
    %49 = vector.load %arg2[%c1_29, %c0_30, %c0_31, %c0_32] : memref<5x2x256x256xf32, #tpu.memory_space<vmem>>, vector<1x1x256x256xf32>
    %50 = vector.shape_cast %49 : vector<1x1x256x256xf32> to vector<256x256xf32>
    %cst_33 = arith.constant dense<0.000000e+00> : vector<16x256xf32>
    %51 = tpu.matmul %48, %50, %cst_33 {dimension_numbers = #tpu.dot_dimension_numbers<[1], [0], [0], [1], [0, 0, 1, 1], [], []>} : vector<16x256xf32>, vector<256x256xf32>, vector<16x256xf32> -> vector<16x256xf32>
    %c16_34 = arith.constant 16 : index
    %c0_35 = arith.constant 0 : index
    %52 = vector.load %arg5[%c16_34, %c0_35] : memref<32x256xf32, #tpu.memory_space<vmem>>, vector<16x256xf32>
    %c1_36 = arith.constant 1 : index
    %c1_37 = arith.constant 1 : index
    %c0_38 = arith.constant 0 : index
    %c0_39 = arith.constant 0 : index
    %53 = vector.load %arg2[%c1_36, %c1_37, %c0_38, %c0_39] : memref<5x2x256x256xf32, #tpu.memory_space<vmem>>, vector<1x1x256x256xf32>
    %54 = vector.shape_cast %53 : vector<1x1x256x256xf32> to vector<256x256xf32>
    %cst_40 = arith.constant dense<0.000000e+00> : vector<16x256xf32>
    %55 = tpu.matmul %52, %54, %cst_40 {dimension_numbers = #tpu.dot_dimension_numbers<[1], [0], [0], [1], [0, 0, 1, 1], [], []>} : vector<16x256xf32>, vector<256x256xf32>, vector<16x256xf32> -> vector<16x256xf32>
    %56 = arith.addf %51, %55 : vector<16x256xf32>
    %c1_41 = arith.constant 1 : index
    %c0_42 = arith.constant 0 : index
    %c0_43 = arith.constant 0 : index
    %57 = vector.load %arg3[%c1_41, %c0_42, %c0_43] : memref<5x4x256xf32, #tpu.memory_space<vmem>>, vector<1x4x256xf32>
    %58 = vector.shape_cast %57 : vector<1x4x256xf32> to vector<4x256xf32>
    %59 = vector.extract_strided_slice %58 {offsets = [0, 0], sizes = [1, 256], strides = [1, 1]} : vector<4x256xf32> to vector<1x256xf32>
    %60 = vector.broadcast %59 : vector<1x256xf32> to vector<16x256xf32>
    %61 = arith.addf %56, %60 : vector<16x256xf32>
    %cst_44 = arith.constant dense<0.000000e+00> : vector<16xf32>
    %62 = vector.multi_reduction <add>, %61, %cst_44 [1] : vector<16x256xf32> to vector<16xf32>
    %63 = vector.shape_cast %62 : vector<16xf32> to vector<16x1xf32>
    %cst_45 = arith.constant 2.560000e+02 : f32
    %64 = vector.broadcast %cst_45 : f32 to vector<16x1xf32>
    %65 = arith.divf %63, %64 : vector<16x1xf32>
    %66 = vector.broadcast %65 : vector<16x1xf32> to vector<16x256xf32>
    %67 = arith.subf %61, %66 : vector<16x256xf32>
    %68 = arith.mulf %67, %67 : vector<16x256xf32>
    %cst_46 = arith.constant dense<0.000000e+00> : vector<16xf32>
    %69 = vector.multi_reduction <add>, %68, %cst_46 [1] : vector<16x256xf32> to vector<16xf32>
    %70 = vector.shape_cast %69 : vector<16xf32> to vector<16x1xf32>
    %cst_47 = arith.constant 2.560000e+02 : f32
    %71 = vector.broadcast %cst_47 : f32 to vector<16x1xf32>
    %72 = arith.divf %70, %71 : vector<16x1xf32>
    %cst_48 = arith.constant 9.99999974E-6 : f32
    %73 = vector.broadcast %cst_48 : f32 to vector<16x1xf32>
    %74 = arith.addf %72, %73 : vector<16x1xf32>
    %75 = math.rsqrt %74 : vector<16x1xf32>
    %76 = vector.broadcast %75 : vector<16x1xf32> to vector<16x256xf32>
    %77 = arith.mulf %67, %76 : vector<16x256xf32>
    %78 = vector.extract_strided_slice %58 {offsets = [1, 0], sizes = [1, 256], strides = [1, 1]} : vector<4x256xf32> to vector<1x256xf32>
    %79 = vector.broadcast %78 : vector<1x256xf32> to vector<16x256xf32>
    %80 = arith.mulf %77, %79 : vector<16x256xf32>
    %81 = vector.extract_strided_slice %58 {offsets = [2, 0], sizes = [1, 256], strides = [1, 1]} : vector<4x256xf32> to vector<1x256xf32>
    %82 = vector.broadcast %81 : vector<1x256xf32> to vector<16x256xf32>
    %83 = arith.addf %80, %82 : vector<16x256xf32>
    %cst_49 = arith.constant 0.000000e+00 : f32
    %84 = vector.broadcast %cst_49 : f32 to vector<16x256xf32>
    %85 = arith.cmpf ogt, %83, %84 : vector<16x256xf32>
    %86 = vector.extract_strided_slice %58 {offsets = [3, 0], sizes = [1, 256], strides = [1, 1]} : vector<4x256xf32> to vector<1x256xf32>
    %87 = vector.broadcast %86 : vector<1x256xf32> to vector<16x256xf32>
    %88 = arith.mulf %87, %83 : vector<16x256xf32>
    %89 = arith.select %85, %83, %88 : vector<16x256xi1>, vector<16x256xf32>
    %c16_50 = arith.constant 16 : index
    %c0_51 = arith.constant 0 : index
    %90 = vector.load %arg5[%c16_50, %c0_51] : memref<32x256xf32, #tpu.memory_space<vmem>>, vector<16x256xf32>
    tpu.vector_store %arg5[%c16_50, %c0_51], %89 {strides = array<i32>} : memref<32x256xf32, #tpu.memory_space<vmem>>, vector<16x256xf32>,
    %c12 = arith.constant 12 : index
    %c0_52 = arith.constant 0 : index
    %91 = vector.load %arg5[%c12, %c0_52] : memref<32x256xf32, #tpu.memory_space<vmem>>, vector<16x256xf32>
    %c2 = arith.constant 2 : index
    %c0_53 = arith.constant 0 : index
    %c0_54 = arith.constant 0 : index
    %c0_55 = arith.constant 0 : index
    %92 = vector.load %arg2[%c2, %c0_53, %c0_54, %c0_55] : memref<5x2x256x256xf32, #tpu.memory_space<vmem>>, vector<1x1x256x256xf32>
    %93 = vector.shape_cast %92 : vector<1x1x256x256xf32> to vector<256x256xf32>
    %cst_56 = arith.constant dense<0.000000e+00> : vector<16x256xf32>
    %94 = tpu.matmul %91, %93, %cst_56 {dimension_numbers = #tpu.dot_dimension_numbers<[1], [0], [0], [1], [0, 0, 1, 1], [], []>} : vector<16x256xf32>, vector<256x256xf32>, vector<16x256xf32> -> vector<16x256xf32>
    %c16_57 = arith.constant 16 : index
    %c0_58 = arith.constant 0 : index
    %95 = vector.load %arg5[%c16_57, %c0_58] : memref<32x256xf32, #tpu.memory_space<vmem>>, vector<16x256xf32>
    %c2_59 = arith.constant 2 : index
    %c1_60 = arith.constant 1 : index
    %c0_61 = arith.constant 0 : index
    %c0_62 = arith.constant 0 : index
    %96 = vector.load %arg2[%c2_59, %c1_60, %c0_61, %c0_62] : memref<5x2x256x256xf32, #tpu.memory_space<vmem>>, vector<1x1x256x256xf32>
    %97 = vector.shape_cast %96 : vector<1x1x256x256xf32> to vector<256x256xf32>
    %cst_63 = arith.constant dense<0.000000e+00> : vector<16x256xf32>
    %98 = tpu.matmul %95, %97, %cst_63 {dimension_numbers = #tpu.dot_dimension_numbers<[1], [0], [0], [1], [0, 0, 1, 1], [], []>} : vector<16x256xf32>, vector<256x256xf32>, vector<16x256xf32> -> vector<16x256xf32>
    %99 = arith.addf %94, %98 : vector<16x256xf32>
    %c2_64 = arith.constant 2 : index
    %c0_65 = arith.constant 0 : index
    %c0_66 = arith.constant 0 : index
    %100 = vector.load %arg3[%c2_64, %c0_65, %c0_66] : memref<5x4x256xf32, #tpu.memory_space<vmem>>, vector<1x4x256xf32>
    %101 = vector.shape_cast %100 : vector<1x4x256xf32> to vector<4x256xf32>
    %102 = vector.extract_strided_slice %101 {offsets = [0, 0], sizes = [1, 256], strides = [1, 1]} : vector<4x256xf32> to vector<1x256xf32>
    %103 = vector.broadcast %102 : vector<1x256xf32> to vector<16x256xf32>
    %104 = arith.addf %99, %103 : vector<16x256xf32>
    %cst_67 = arith.constant dense<0.000000e+00> : vector<16xf32>
    %105 = vector.multi_reduction <add>, %104, %cst_67 [1] : vector<16x256xf32> to vector<16xf32>
    %106 = vector.shape_cast %105 : vector<16xf32> to vector<16x1xf32>
    %cst_68 = arith.constant 2.560000e+02 : f32
    %107 = vector.broadcast %cst_68 : f32 to vector<16x1xf32>
    %108 = arith.divf %106, %107 : vector<16x1xf32>
    %109 = vector.broadcast %108 : vector<16x1xf32> to vector<16x256xf32>
    %110 = arith.subf %104, %109 : vector<16x256xf32>
    %111 = arith.mulf %110, %110 : vector<16x256xf32>
    %cst_69 = arith.constant dense<0.000000e+00> : vector<16xf32>
    %112 = vector.multi_reduction <add>, %111, %cst_69 [1] : vector<16x256xf32> to vector<16xf32>
    %113 = vector.shape_cast %112 : vector<16xf32> to vector<16x1xf32>
    %cst_70 = arith.constant 2.560000e+02 : f32
    %114 = vector.broadcast %cst_70 : f32 to vector<16x1xf32>
    %115 = arith.divf %113, %114 : vector<16x1xf32>
    %cst_71 = arith.constant 9.99999974E-6 : f32
    %116 = vector.broadcast %cst_71 : f32 to vector<16x1xf32>
    %117 = arith.addf %115, %116 : vector<16x1xf32>
    %118 = math.rsqrt %117 : vector<16x1xf32>
    %119 = vector.broadcast %118 : vector<16x1xf32> to vector<16x256xf32>
    %120 = arith.mulf %110, %119 : vector<16x256xf32>
    %121 = vector.extract_strided_slice %101 {offsets = [1, 0], sizes = [1, 256], strides = [1, 1]} : vector<4x256xf32> to vector<1x256xf32>
    %122 = vector.broadcast %121 : vector<1x256xf32> to vector<16x256xf32>
    %123 = arith.mulf %120, %122 : vector<16x256xf32>
    %124 = vector.extract_strided_slice %101 {offsets = [2, 0], sizes = [1, 256], strides = [1, 1]} : vector<4x256xf32> to vector<1x256xf32>
    %125 = vector.broadcast %124 : vector<1x256xf32> to vector<16x256xf32>
    %126 = arith.addf %123, %125 : vector<16x256xf32>
    %cst_72 = arith.constant 0.000000e+00 : f32
    %127 = vector.broadcast %cst_72 : f32 to vector<16x256xf32>
    %128 = arith.cmpf ogt, %126, %127 : vector<16x256xf32>
    %129 = vector.extract_strided_slice %101 {offsets = [3, 0], sizes = [1, 256], strides = [1, 1]} : vector<4x256xf32> to vector<1x256xf32>
    %130 = vector.broadcast %129 : vector<1x256xf32> to vector<16x256xf32>
    %131 = arith.mulf %130, %126 : vector<16x256xf32>
    %132 = arith.select %128, %126, %131 : vector<16x256xi1>, vector<16x256xf32>
    %c16_73 = arith.constant 16 : index
    %c0_74 = arith.constant 0 : index
    %133 = vector.load %arg5[%c16_73, %c0_74] : memref<32x256xf32, #tpu.memory_space<vmem>>, vector<16x256xf32>
    tpu.vector_store %arg5[%c16_73, %c0_74], %132 {strides = array<i32>} : memref<32x256xf32, #tpu.memory_space<vmem>>, vector<16x256xf32>,
    %c8 = arith.constant 8 : index
    %c0_75 = arith.constant 0 : index
    %134 = vector.load %arg5[%c8, %c0_75] : memref<32x256xf32, #tpu.memory_space<vmem>>, vector<16x256xf32>
    %c3 = arith.constant 3 : index
    %c0_76 = arith.constant 0 : index
    %c0_77 = arith.constant 0 : index
    %c0_78 = arith.constant 0 : index
    %135 = vector.load %arg2[%c3, %c0_76, %c0_77, %c0_78] : memref<5x2x256x256xf32, #tpu.memory_space<vmem>>, vector<1x1x256x256xf32>
    %136 = vector.shape_cast %135 : vector<1x1x256x256xf32> to vector<256x256xf32>
    %cst_79 = arith.constant dense<0.000000e+00> : vector<16x256xf32>
    %137 = tpu.matmul %134, %136, %cst_79 {dimension_numbers = #tpu.dot_dimension_numbers<[1], [0], [0], [1], [0, 0, 1, 1], [], []>} : vector<16x256xf32>, vector<256x256xf32>, vector<16x256xf32> -> vector<16x256xf32>
    %c16_80 = arith.constant 16 : index
    %c0_81 = arith.constant 0 : index
    %138 = vector.load %arg5[%c16_80, %c0_81] : memref<32x256xf32, #tpu.memory_space<vmem>>, vector<16x256xf32>
    %c3_82 = arith.constant 3 : index
    %c1_83 = arith.constant 1 : index
    %c0_84 = arith.constant 0 : index
    %c0_85 = arith.constant 0 : index
    %139 = vector.load %arg2[%c3_82, %c1_83, %c0_84, %c0_85] : memref<5x2x256x256xf32, #tpu.memory_space<vmem>>, vector<1x1x256x256xf32>
    %140 = vector.shape_cast %139 : vector<1x1x256x256xf32> to vector<256x256xf32>
    %cst_86 = arith.constant dense<0.000000e+00> : vector<16x256xf32>
    %141 = tpu.matmul %138, %140, %cst_86 {dimension_numbers = #tpu.dot_dimension_numbers<[1], [0], [0], [1], [0, 0, 1, 1], [], []>} : vector<16x256xf32>, vector<256x256xf32>, vector<16x256xf32> -> vector<16x256xf32>
    %142 = arith.addf %137, %141 : vector<16x256xf32>
    %c3_87 = arith.constant 3 : index
    %c0_88 = arith.constant 0 : index
    %c0_89 = arith.constant 0 : index
    %143 = vector.load %arg3[%c3_87, %c0_88, %c0_89] : memref<5x4x256xf32, #tpu.memory_space<vmem>>, vector<1x4x256xf32>
    %144 = vector.shape_cast %143 : vector<1x4x256xf32> to vector<4x256xf32>
    %145 = vector.extract_strided_slice %144 {offsets = [0, 0], sizes = [1, 256], strides = [1, 1]} : vector<4x256xf32> to vector<1x256xf32>
    %146 = vector.broadcast %145 : vector<1x256xf32> to vector<16x256xf32>
    %147 = arith.addf %142, %146 : vector<16x256xf32>
    %cst_90 = arith.constant dense<0.000000e+00> : vector<16xf32>
    %148 = vector.multi_reduction <add>, %147, %cst_90 [1] : vector<16x256xf32> to vector<16xf32>
    %149 = vector.shape_cast %148 : vector<16xf32> to vector<16x1xf32>
    %cst_91 = arith.constant 2.560000e+02 : f32
    %150 = vector.broadcast %cst_91 : f32 to vector<16x1xf32>
    %151 = arith.divf %149, %150 : vector<16x1xf32>
    %152 = vector.broadcast %151 : vector<16x1xf32> to vector<16x256xf32>
    %153 = arith.subf %147, %152 : vector<16x256xf32>
    %154 = arith.mulf %153, %153 : vector<16x256xf32>
    %cst_92 = arith.constant dense<0.000000e+00> : vector<16xf32>
    %155 = vector.multi_reduction <add>, %154, %cst_92 [1] : vector<16x256xf32> to vector<16xf32>
    %156 = vector.shape_cast %155 : vector<16xf32> to vector<16x1xf32>
    %cst_93 = arith.constant 2.560000e+02 : f32
    %157 = vector.broadcast %cst_93 : f32 to vector<16x1xf32>
    %158 = arith.divf %156, %157 : vector<16x1xf32>
    %cst_94 = arith.constant 9.99999974E-6 : f32
    %159 = vector.broadcast %cst_94 : f32 to vector<16x1xf32>
    %160 = arith.addf %158, %159 : vector<16x1xf32>
    %161 = math.rsqrt %160 : vector<16x1xf32>
    %162 = vector.broadcast %161 : vector<16x1xf32> to vector<16x256xf32>
    %163 = arith.mulf %153, %162 : vector<16x256xf32>
    %164 = vector.extract_strided_slice %144 {offsets = [1, 0], sizes = [1, 256], strides = [1, 1]} : vector<4x256xf32> to vector<1x256xf32>
    %165 = vector.broadcast %164 : vector<1x256xf32> to vector<16x256xf32>
    %166 = arith.mulf %163, %165 : vector<16x256xf32>
    %167 = vector.extract_strided_slice %144 {offsets = [2, 0], sizes = [1, 256], strides = [1, 1]} : vector<4x256xf32> to vector<1x256xf32>
    %168 = vector.broadcast %167 : vector<1x256xf32> to vector<16x256xf32>
    %169 = arith.addf %166, %168 : vector<16x256xf32>
    %cst_95 = arith.constant 0.000000e+00 : f32
    %170 = vector.broadcast %cst_95 : f32 to vector<16x256xf32>
    %171 = arith.cmpf ogt, %169, %170 : vector<16x256xf32>
    %172 = vector.extract_strided_slice %144 {offsets = [3, 0], sizes = [1, 256], strides = [1, 1]} : vector<4x256xf32> to vector<1x256xf32>
    %173 = vector.broadcast %172 : vector<1x256xf32> to vector<16x256xf32>
    %174 = arith.mulf %173, %169 : vector<16x256xf32>
    %175 = arith.select %171, %169, %174 : vector<16x256xi1>, vector<16x256xf32>
    %c16_96 = arith.constant 16 : index
    %c0_97 = arith.constant 0 : index
    %176 = vector.load %arg5[%c16_96, %c0_97] : memref<32x256xf32, #tpu.memory_space<vmem>>, vector<16x256xf32>
    tpu.vector_store %arg5[%c16_96, %c0_97], %175 {strides = array<i32>} : memref<32x256xf32, #tpu.memory_space<vmem>>, vector<16x256xf32>,
    %c0_98 = arith.constant 0 : index
    %c0_99 = arith.constant 0 : index
    %177 = vector.load %arg5[%c0_98, %c0_99] : memref<32x256xf32, #tpu.memory_space<vmem>>, vector<16x256xf32>
    %c4 = arith.constant 4 : index
    %c0_100 = arith.constant 0 : index
    %c0_101 = arith.constant 0 : index
    %c0_102 = arith.constant 0 : index
    %178 = vector.load %arg2[%c4, %c0_100, %c0_101, %c0_102] : memref<5x2x256x256xf32, #tpu.memory_space<vmem>>, vector<1x1x256x256xf32>
    %179 = vector.shape_cast %178 : vector<1x1x256x256xf32> to vector<256x256xf32>
    %cst_103 = arith.constant dense<0.000000e+00> : vector<16x256xf32>
    %180 = tpu.matmul %177, %179, %cst_103 {dimension_numbers = #tpu.dot_dimension_numbers<[1], [0], [0], [1], [0, 0, 1, 1], [], []>} : vector<16x256xf32>, vector<256x256xf32>, vector<16x256xf32> -> vector<16x256xf32>
    %c16_104 = arith.constant 16 : index
    %c0_105 = arith.constant 0 : index
    %181 = vector.load %arg5[%c16_104, %c0_105] : memref<32x256xf32, #tpu.memory_space<vmem>>, vector<16x256xf32>
    %c4_106 = arith.constant 4 : index
    %c1_107 = arith.constant 1 : index
    %c0_108 = arith.constant 0 : index
    %c0_109 = arith.constant 0 : index
    %182 = vector.load %arg2[%c4_106, %c1_107, %c0_108, %c0_109] : memref<5x2x256x256xf32, #tpu.memory_space<vmem>>, vector<1x1x256x256xf32>
    %183 = vector.shape_cast %182 : vector<1x1x256x256xf32> to vector<256x256xf32>
    %cst_110 = arith.constant dense<0.000000e+00> : vector<16x256xf32>
    %184 = tpu.matmul %181, %183, %cst_110 {dimension_numbers = #tpu.dot_dimension_numbers<[1], [0], [0], [1], [0, 0, 1, 1], [], []>} : vector<16x256xf32>, vector<256x256xf32>, vector<16x256xf32> -> vector<16x256xf32>
    %185 = arith.addf %180, %184 : vector<16x256xf32>
    %c4_111 = arith.constant 4 : index
    %c0_112 = arith.constant 0 : index
    %c0_113 = arith.constant 0 : index
    %186 = vector.load %arg3[%c4_111, %c0_112, %c0_113] : memref<5x4x256xf32, #tpu.memory_space<vmem>>, vector<1x4x256xf32>
    %187 = vector.shape_cast %186 : vector<1x4x256xf32> to vector<4x256xf32>
    %188 = vector.extract_strided_slice %187 {offsets = [0, 0], sizes = [1, 256], strides = [1, 1]} : vector<4x256xf32> to vector<1x256xf32>
    %189 = vector.broadcast %188 : vector<1x256xf32> to vector<16x256xf32>
    %190 = arith.addf %185, %189 : vector<16x256xf32>
    %cst_114 = arith.constant dense<0.000000e+00> : vector<16xf32>
    %191 = vector.multi_reduction <add>, %190, %cst_114 [1] : vector<16x256xf32> to vector<16xf32>
    %192 = vector.shape_cast %191 : vector<16xf32> to vector<16x1xf32>
    %cst_115 = arith.constant 2.560000e+02 : f32
    %193 = vector.broadcast %cst_115 : f32 to vector<16x1xf32>
    %194 = arith.divf %192, %193 : vector<16x1xf32>
    %195 = vector.broadcast %194 : vector<16x1xf32> to vector<16x256xf32>
    %196 = arith.subf %190, %195 : vector<16x256xf32>
    %197 = arith.mulf %196, %196 : vector<16x256xf32>
    %cst_116 = arith.constant dense<0.000000e+00> : vector<16xf32>
    %198 = vector.multi_reduction <add>, %197, %cst_116 [1] : vector<16x256xf32> to vector<16xf32>
    %199 = vector.shape_cast %198 : vector<16xf32> to vector<16x1xf32>
    %cst_117 = arith.constant 2.560000e+02 : f32
    %200 = vector.broadcast %cst_117 : f32 to vector<16x1xf32>
    %201 = arith.divf %199, %200 : vector<16x1xf32>
    %cst_118 = arith.constant 9.99999974E-6 : f32
    %202 = vector.broadcast %cst_118 : f32 to vector<16x1xf32>
    %203 = arith.addf %201, %202 : vector<16x1xf32>
    %204 = math.rsqrt %203 : vector<16x1xf32>
    %205 = vector.broadcast %204 : vector<16x1xf32> to vector<16x256xf32>
    %206 = arith.mulf %196, %205 : vector<16x256xf32>
    %207 = vector.extract_strided_slice %187 {offsets = [1, 0], sizes = [1, 256], strides = [1, 1]} : vector<4x256xf32> to vector<1x256xf32>
    %208 = vector.broadcast %207 : vector<1x256xf32> to vector<16x256xf32>
    %209 = arith.mulf %206, %208 : vector<16x256xf32>
    %210 = vector.extract_strided_slice %187 {offsets = [2, 0], sizes = [1, 256], strides = [1, 1]} : vector<4x256xf32> to vector<1x256xf32>
    %211 = vector.broadcast %210 : vector<1x256xf32> to vector<16x256xf32>
    %212 = arith.addf %209, %211 : vector<16x256xf32>
    %cst_119 = arith.constant 0.000000e+00 : f32
    %213 = vector.broadcast %cst_119 : f32 to vector<16x256xf32>
    %214 = arith.cmpf ogt, %212, %213 : vector<16x256xf32>
    %215 = vector.extract_strided_slice %187 {offsets = [3, 0], sizes = [1, 256], strides = [1, 1]} : vector<4x256xf32> to vector<1x256xf32>
    %216 = vector.broadcast %215 : vector<1x256xf32> to vector<16x256xf32>
    %217 = arith.mulf %216, %212 : vector<16x256xf32>
    %218 = arith.select %214, %212, %217 : vector<16x256xi1>, vector<16x256xf32>
    %c16_120 = arith.constant 16 : index
    %c0_121 = arith.constant 0 : index
    %219 = vector.load %arg5[%c16_120, %c0_121] : memref<32x256xf32, #tpu.memory_space<vmem>>, vector<16x256xf32>
    tpu.vector_store %arg5[%c16_120, %c0_121], %218 {strides = array<i32>} : memref<32x256xf32, #tpu.memory_space<vmem>>, vector<16x256xf32>,
    %c16_122 = arith.constant 16 : index
    %c0_123 = arith.constant 0 : index
    %220 = vector.load %arg5[%c16_122, %c0_123] : memref<32x256xf32, #tpu.memory_space<vmem>>, vector<16x256xf32>
    %c0_124 = arith.constant 0 : index
    %c0_125 = arith.constant 0 : index
    %c0_126 = arith.constant 0 : index
    %221 = vector.load %arg4[%c0_124, %c0_125, %c0_126] : memref<1x16x256xf32, #tpu.memory_space<vmem>>, vector<1x16x256xf32>
    %222 = vector.shape_cast %221 : vector<1x16x256xf32> to vector<16x256xf32>
    %223 = vector.shape_cast %220 : vector<16x256xf32> to vector<1x16x256xf32>
    tpu.vector_store %arg4[%c0_124, %c0_125, %c0_126], %223 {strides = array<i32>} : memref<1x16x256xf32, #tpu.memory_space<vmem>>, vector<1x16x256xf32>,
    return
  }
  func.func @transform_0(%arg0: i32) -> (i32, i32, i32) {
    %c0_i32 = arith.constant 0 : i32
    %c0_i32_0 = arith.constant 0 : i32
    %c0_i32_1 = arith.constant 0 : i32
    return %arg0, %c0_i32, %c0_i32_0 : i32, i32, i32
  }
  func.func @transform_1(%arg0: i32) -> (i32, i32, i32, i32) {
    %c0_i32 = arith.constant 0 : i32
    %c0_i32_0 = arith.constant 0 : i32
    %c0_i32_1 = arith.constant 0 : i32
    %c0_i32_2 = arith.constant 0 : i32
    %c0_i32_3 = arith.constant 0 : i32
    return %c0_i32, %c0_i32_0, %c0_i32_1, %c0_i32_2 : i32, i32, i32, i32
  }
  func.func @transform_2(%arg0: i32) -> (i32, i32, i32) {
    %c0_i32 = arith.constant 0 : i32
    %c0_i32_0 = arith.constant 0 : i32
    %c0_i32_1 = arith.constant 0 : i32
    %c0_i32_2 = arith.constant 0 : i32
    return %c0_i32, %c0_i32_0, %c0_i32_1 : i32, i32, i32
  }
  func.func @transform_3(%arg0: i32) -> (i32, i32, i32) {
    %c0_i32 = arith.constant 0 : i32
    %c0_i32_0 = arith.constant 0 : i32
    %c0_i32_1 = arith.constant 0 : i32
    return %arg0, %c0_i32, %c0_i32_0 : i32, i32, i32
  }
}

</mosaic_0001>

<llo_original>
// kernel: dense_block.1
$region0: #{dense_block.1}
  #allocation0 [shape = 'u32[]', space=smem, size = 0x4, offset = 0x4, fixed_abs, tag = 'smem constant byte address 0x4 - core index']
  #allocation1 [shape = 'u32[144,128]{1,0:T(1,128)}', space=vmem, size = 0x12000, scoped, tag = 'internal scratch']
  #allocation2 [shape = 'f32[32,256]{1,0:T(8,128)}', space=vmem, size = 0x8000, scoped, tag = 'scratch operand']
  %s0 = inlined_call_operand.vmem [shape: f32[2,16,256], index: 0, kind: input, shape index: {}]
  %s1 = inlined_call_operand.hbm [shape: f32[5,2,256,256], index: 1, kind: input, shape index: {}]
  %s2 = inlined_call_operand.hbm [shape: f32[5,4,256], index: 2, kind: input, shape index: {}]
  %s3 = inlined_call_operand.vmem [shape: f32[2,16,256], index: 3, kind: output, shape index: {}]
  %s4 = sld [smem:[#allocation0]]
  $region53: #{dense_block.1} parent=0
    _
  %s6 = ssub.s32 1, %s4
  %s7 = scalar_select 0, %s6, %s4
  $region1: #{dense_block.1} parent=0
    #allocation3 [shape = 'u8[2621440]{0}', space=vmem, size = 0x280000, scoped, tag = 'input window, operand 1, single buffered']
    #allocation4 [shape = 's32[2]{0}', space=sflag, size = 0x8, scoped, tag = 'scoped memory for dense_block.1']
    #allocation5 [shape = 'u8[20480]{0}', space=vmem, size = 0x5000, scoped, tag = 'input window, operand 2, single buffered']
    #allocation6 [shape = 's32[1]{0}', space=sflag, size = 0x4, scoped, tag = 'scoped memory for dense_block.1']
    %8 = vsyncpa [#allocation4], 0
    %9 = vsyncpa [#allocation6], 0
    loop: start=0, step=1, limit=4
    $region2: #{dense_block.1} parent=1 // loop_pre_header
      _
    $region3: #{dense_block.1} parent=1 // loop_header
      %s11 = sphi 0, %s15
      %p12 = scmp.ge.s32.totalorder %s11, 4
      %s21 = sphi 0, %s23
      %s24 = sphi 0, %s21
      %s25 = sphi 0, %s24
      %s41 = sphi 0, %s25
      %s45 = sphi 0, %s45
      %s47 = sphi 0, %s45
      %s48 = sphi 0, %s47
      %s62 = sphi 0, %s48
      %s66 = sphi 0, %s66
      %s68 = sphi 0, %s66
      %s69 = sphi 0, %s68
      %s83 = sphi 0, %s69
      %s89 = sphi 0, %s91
      %s92 = sphi 0, %s89
      %s93 = sphi 0, %s92
      %s109 = sphi 0, %s93
    $region4: #{dense_block.1} parent=1 // loop_header_branch
      %14 = sbr.rel (%p12) target = $region8
    $region5: #{dense_block.1} parent=1 // loop_body
      %s16 = ssub.s32 %s11, 1
      %s17 = ssub.s32 %s11, 2
      %s18 = sadd.s32 %s11, 1
      %s19 = ssub.s32 %s11, %s18
      %p20 = scmp.eq.s32.totalorder %s19, 0
      %s22 = sadd.s32 %s21, 1
      %s23 = scalar_select %p20, %s21, %s22
      %p26 = pneg %p20
      %p27 = scmp.eq.s32.totalorder %s11, 1
      %p28 = por %p26, %p27
      %p29 = scmp.ne.s32.totalorder %s21, %s24
      %p30 = scmp.eq.s32.totalorder %s11, 0
      %p31 = por %p29, %p30
      %p32 = scmp.ne.s32.totalorder %s21, %s24
      %p33 = scmp.eq.s32.totalorder %s16, 1
      %p34 = por %p32, %p33
      %p35 = scmp.ne.s32.totalorder %s24, %s25
      %p36 = scmp.eq.s32.totalorder %s16, 0
      %p37 = por %p35, %p36
      %p38 = scmp.ne.s32.totalorder %s24, %s25
      %p39 = scmp.eq.s32.totalorder %s17, 1
      %p40 = por %p38, %p39
      %p42 = scmp.ne.s32.totalorder %s25, %s41
      %p43 = scmp.eq.s32.totalorder %s17, 0
      %p44 = por %p42, %p43
      %s46 = sadd.s32 %s45, 1
      %p49 = scmp.eq.s32.totalorder %s11, 1
      %p50 = scmp.ne.s32.totalorder %s45, %s47
      %p51 = scmp.eq.s32.totalorder %s11, 0
      %p52 = por %p50, %p51
      %p53 = scmp.ne.s32.totalorder %s45, %s47
      %p54 = scmp.eq.s32.totalorder %s16, 1
      %p55 = por %p53, %p54
      %p56 = scmp.ne.s32.totalorder %s47, %s48
      %p57 = scmp.eq.s32.totalorder %s16, 0
      %p58 = por %p56, %p57
      %p59 = scmp.ne.s32.totalorder %s47, %s48
      %p60 = scmp.eq.s32.totalorder %s17, 1
      %p61 = por %p59, %p60
      %p63 = scmp.ne.s32.totalorder %s48, %s62
      %p64 = scmp.eq.s32.totalorder %s17, 0
      %p65 = por %p63, %p64
      %s67 = sadd.s32 %s66, 1
      %p70 = scmp.eq.s32.totalorder %s11, 1
      %p71 = scmp.ne.s32.totalorder %s66, %s68
      %p72 = scmp.eq.s32.totalorder %s11, 0
      %p73 = por %p71, %p72
      %p74 = scmp.ne.s32.totalorder %s66, %s68
      %p75 = scmp.eq.s32.totalorder %s16, 1
      %p76 = por %p74, %p75
      %p77 = scmp.ne.s32.totalorder %s68, %s69
      %p78 = scmp.eq.s32.totalorder %s16, 0
      %p79 = por %p77, %p78
      %p80 = scmp.ne.s32.totalorder %s68, %s69
      %p81 = scmp.eq.s32.totalorder %s17, 1
      %p82 = por %p80, %p81
      %p84 = scmp.ne.s32.totalorder %s69, %s83
      %p85 = scmp.eq.s32.totalorder %s17, 0
      %p86 = por %p84, %p85
      %s87 = ssub.s32 %s11, %s18
      %p88 = scmp.eq.s32.totalorder %s87, 0
      %s90 = sadd.s32 %s89, 1
      %s91 = scalar_select %p88, %s89, %s90
      %p94 = pneg %p88
      %p95 = scmp.eq.s32.totalorder %s11, 1
      %p96 = por %p94, %p95
      %p97 = scmp.ne.s32.totalorder %s89, %s92
      %p98 = scmp.eq.s32.totalorder %s11, 0
      %p99 = por %p97, %p98
      %p100 = scmp.ne.s32.totalorder %s89, %s92
      %p101 = scmp.eq.s32.totalorder %s16, 1
      %p102 = por %p100, %p101
      %p103 = scmp.ne.s32.totalorder %s92, %s93
      %p104 = scmp.eq.s32.totalorder %s16, 0
      %p105 = por %p103, %p104
      %p106 = scmp.ne.s32.totalorder %s92, %s93
      %p107 = scmp.eq.s32.totalorder %s17, 1
      %p108 = por %p106, %p107
      %p110 = scmp.ne.s32.totalorder %s93, %s109
      %p111 = scmp.eq.s32.totalorder %s17, 0
      %p112 = por %p110, %p111
      %p113 = scmp.le.s32.totalorder 1, %s11
      %p114 = scmp.lt.s32.totalorder %s11, 3
      %p115 = pnand %p113, %p114
      %p116 = pneg %p115
      // Predicated region
      $region9: #{dense_block.1} parent=5 // pred_check
        _
      $region10: #{dense_block.1} parent=5 // pred_check_branch
        %118 = sbr.rel (%p115) target = $region12
      $region11: #{dense_block.1} parent=5 // pred_region
        %s119 = ssub.s32 %s11, 1
        // Predicated region
        $region13: #{dense_block.1} parent=11 // pred_check
          %p120 = pneg %p58
        $region14: #{dense_block.1} parent=11 // pred_check_branch
          %122 = sbr.rel (%p120) target = $region16
        $region15: #{dense_block.1} parent=11 // pred_region
          %s124 = ssub.s32 81920, 81920
          %125 = vsyncadd [#allocation4], %s124
          %s126 = sshll.u32 [#allocation3], 4
          %s127 = int_to_ptr.vmem [resolvable:$true] %s126
          %132 = dma.hbm_to_vmem [thread:$0]  %s1, 81920, %s127, [#allocation4], 256, 256, 16
        $region16: #{dense_block.1} parent=11 // pred_fallthru
          _
        // Predicated region
        $region17: #{dense_block.1} parent=11 // pred_check
          %p133 = pneg %p79
        $region18: #{dense_block.1} parent=11 // pred_check_branch
          %135 = sbr.rel (%p133) target = $region20
        $region19: #{dense_block.1} parent=11 // pred_region
          %s137 = ssub.s32 640, 640
          %138 = vsyncadd [#allocation6], %s137
          %s139 = sshll.u32 [#allocation5], 4
          %s140 = int_to_ptr.vmem [resolvable:$true] %s139
          %145 = dma.hbm_to_vmem [thread:$0]  %s2, 640, %s140, [#allocation6], 128, 128, 8
        $region20: #{dense_block.1} parent=11 // pred_fallthru
          _
      $region12: #{dense_block.1} parent=5 // pred_fallthru
        _
      %p146 = scmp.lt.s32.totalorder %s11, 2
      // Predicated region
      $region21: #{dense_block.1} parent=5 // pred_check
        %p147 = pneg %p146
      $region22: #{dense_block.1} parent=5 // pred_check_branch
        %149 = sbr.rel (%p147) target = $region24
      $region23: #{dense_block.1} parent=5 // pred_region
        // Predicated region
        $region25: #{dense_block.1} parent=23 // pred_check
          %p150 = pneg %p31
        $region26: #{dense_block.1} parent=23 // pred_check_branch
          %152 = sbr.rel (%p150) target = $region28
        $region27: #{dense_block.1} parent=23 // pred_region
          %p153 = scmp.lt.s32.totalorder %s11, 1
          %s154 = scalar_select %p153, %s11, 1
          %s155 = smul.addr %s154, 4
          %s156 = smul.addr %s155, 8
          %s157 = scalar_lea.vmem %s0, %s156
        $region28: #{dense_block.1} parent=23 // pred_fallthru
          _
      $region24: #{dense_block.1} parent=5 // pred_fallthru
        _
      %p158 = scmp.le.s32.totalorder 1, %s11
      %p159 = scmp.lt.s32.totalorder %s11, 3
      %p160 = pnand %p158, %p159
      %p161 = pneg %p160
      // Predicated region
      $region29: #{dense_block.1} parent=5 // pred_check
        _
      $region30: #{dense_block.1} parent=5 // pred_check_branch
        %163 = sbr.rel (%p160) target = $region32
      $region31: #{dense_block.1} parent=5 // pred_region
        %s164 = ssub.s32 %s11, 1
        // Predicated region
        $region33: #{dense_block.1} parent=31 // pred_check
          %p165 = pneg %p58
        $region34: #{dense_block.1} parent=31 // pred_check_branch
          %167 = sbr.rel (%p165) target = $region36
        $region35: #{dense_block.1} parent=31 // pred_region
          %168 = dma.done [#allocation4], 81920
        $region36: #{dense_block.1} parent=31 // pred_fallthru
          _
        // Predicated region
        $region37: #{dense_block.1} parent=31 // pred_check
          %p169 = pneg %p79
        $region38: #{dense_block.1} parent=31 // pred_check_branch
          %171 = sbr.rel (%p169) target = $region40
        $region39: #{dense_block.1} parent=31 // pred_region
          %172 = dma.done [#allocation6], 640
        $region40: #{dense_block.1} parent=31 // pred_fallthru
          _
        %p173 = scmp.lt.s32.totalorder %s16, 1
        %s174 = scalar_select %p173, %s16, 1
        %s175 = smul.addr %s174, 4
        %s176 = smul.addr %s175, 8
        %s177 = scalar_lea.vmem %s0, %s176
        %p178 = pneg %p37
        %p179 = pneg %p34
        %p180 = pneg %p58
        %p181 = pneg %p55
        %p182 = pneg %p79
        %p183 = pneg %p76
        %p184 = pneg %p105
        %p185 = pneg %p102
        %p186 = scmp.lt.s32.totalorder %s16, 1
        %s187 = scalar_select %p186, %s16, 1
        %s188 = smul.addr %s187, 4
        %s189 = smul.addr %s188, 8
        %s190 = scalar_lea.vmem %s3, %s189
        %p191 = scmp.lt.s32.totalorder %s16, 1
        %s192 = scalar_select %p191, %s16, 1
        %s193 = smul.addr %s192, 4
        %s194 = smul.addr %s193, 8
        %s195 = scalar_lea.vmem %s0, %s194
        %p196 = scmp.lt.s32.totalorder %s16, 1
        %s197 = scalar_select %p196, %s16, 1
        %s198 = smul.addr %s197, 4
        %s199 = smul.addr %s198, 8
        %s200 = scalar_lea.vmem %s3, %s199
        %201 = vst [vmem:[#allocation2] sm:$0xff] 0.0
        %202 = vst [vmem:[#allocation2 + $0x8] sm:$0xff] 0.0
        %203 = vst [vmem:[#allocation2 + $0x10] sm:$0xff] 0.0
        %204 = vst [vmem:[#allocation2 + $0x18] sm:$0xff] 0.0
        %v205 = vld [vmem:[%s195] sm:$0xff]
        %v206 = vld [vmem:[%s195 + $0x8] sm:$0xff]
        %v207 = vld [vmem:[%s195 + $0x10] sm:$0xff]
        %v208 = vld [vmem:[%s195 + $0x18] sm:$0xff]
        %209 = vst [vmem:[#allocation2 + $0x20] sm:$0xff] %v205
        %210 = vst [vmem:[#allocation2 + $0x28] sm:$0xff] %v206
        %211 = vst [vmem:[#allocation2 + $0x30] sm:$0xff] %v207
        %212 = vst [vmem:[#allocation2 + $0x38] sm:$0xff] %v208
        %v213 = vld [vmem:[#allocation2 + $0x10] sm:$0x80]
        %v214 = vld [vmem:[#allocation2 + $0x18] sm:$0x80]
        %v215 = vld [vmem:[#allocation2 + $0x20] sm:$0xff]
        %v216 = vld [vmem:[#allocation2 + $0x28] sm:$0xff]
        %v217 = vld [vmem:[#allocation2 + $0x30] sm:$0x7f]
        %v218 = vld [vmem:[#allocation2 + $0x38] sm:$0x7f]
        %v219 = vld [vmem:[#allocation3] sm:$0xff]
        %v220 = vld [vmem:[#allocation3 + $0x8] sm:$0xff]
        %v221 = vld [vmem:[#allocation3 + $0x10] sm:$0xff]
        %v222 = vld [vmem:[#allocation3 + $0x18] sm:$0xff]
        %v223 = vld [vmem:[#allocation3 + $0x20] sm:$0xff]
        %v224 = vld [vmem:[#allocation3 + $0x28] sm:$0xff]
        %v225 = vld [vmem:[#allocation3 + $0x30] sm:$0xff]
        %v226 = vld [vmem:[#allocation3 + $0x38] sm:$0xff]
        %v227 = vld [vmem:[#allocation3 + $0x40] sm:$0xff]
        %v228 = vld [vmem:[#allocation3 + $0x48] sm:$0xff]
        %v229 = vld [vmem:[#allocation3 + $0x50] sm:$0xff]
        %v230 = vld [vmem:[#allocation3 + $0x58] sm:$0xff]
        %v231 = vld [vmem:[#allocation3 + $0x60] sm:$0xff]
        %v232 = vld [vmem:[#allocation3 + $0x68] sm:$0xff]
        %v233 = vld [vmem:[#allocation3 + $0x70] sm:$0xff]
        %v234 = vld [vmem:[#allocation3 + $0x78] sm:$0xff]
        %v235 = vld [vmem:[#allocation3 + $0x80] sm:$0xff]
        %v236 = vld [vmem:[#allocation3 + $0x88] sm:$0xff]
        %v237 = vld [vmem:[#allocation3 + $0x90] sm:$0xff]
        %v238 = vld [vmem:[#allocation3 + $0x98] sm:$0xff]
        %v239 = vld [vmem:[#allocation3 + $0xa0] sm:$0xff]
        %v240 = vld [vmem:[#allocation3 + $0xa8] sm:$0xff]
        %v241 = vld [vmem:[#allocation3 + $0xb0] sm:$0xff]
        %v242 = vld [vmem:[#allocation3 + $0xb8] sm:$0xff]
        %v243 = vld [vmem:[#allocation3 + $0xc0] sm:$0xff]
        %v244 = vld [vmem:[#allocation3 + $0xc8] sm:$0xff]
        %v245 = vld [vmem:[#allocation3 + $0xd0] sm:$0xff]
        %v246 = vld [vmem:[#allocation3 + $0xd8] sm:$0xff]
        %v247 = vld [vmem:[#allocation3 + $0xe0] sm:$0xff]
        %v248 = vld [vmem:[#allocation3 + $0xe8] sm:$0xff]
        %v249 = vld [vmem:[#allocation3 + $0xf0] sm:$0xff]
        %v250 = vld [vmem:[#allocation3 + $0xf8] sm:$0xff]
        %v251 = vld [vmem:[#allocation3 + $0x100] sm:$0xff]
        %v252 = vld [vmem:[#allocation3 + $0x108] sm:$0xff]
        %v253 = vld [vmem:[#allocation3 + $0x110] sm:$0xff]
        %v254 = vld [vmem:[#allocation3 + $0x118] sm:$0xff]
        %v255 = vld [vmem:[#allocation3 + $0x120] sm:$0xff]
        %v256 = vld [vmem:[#allocation3 + $0x128] sm:$0xff]
        %v257 = vld [vmem:[#allocation3 + $0x130] sm:$0xff]
        %v258 = vld [vmem:[#allocation3 + $0x138] sm:$0xff]
        %v259 = vld [vmem:[#allocation3 + $0x140] sm:$0xff]
        %v260 = vld [vmem:[#allocation3 + $0x148] sm:$0xff]
        %v261 = vld [vmem:[#allocation3 + $0x150] sm:$0xff]
        %v262 = vld [vmem:[#allocation3 + $0x158] sm:$0xff]
        %v263 = vld [vmem:[#allocation3 + $0x160] sm:$0xff]
        %v264 = vld [vmem:[#allocation3 + $0x168] sm:$0xff]
        %v265 = vld [vmem:[#allocation3 + $0x170] sm:$0xff]
        %v266 = vld [vmem:[#allocation3 + $0x178] sm:$0xff]
        %v267 = vld [vmem:[#allocation3 + $0x180] sm:$0xff]
        %v268 = vld [vmem:[#allocation3 + $0x188] sm:$0xff]
        %v269 = vld [vmem:[#allocation3 + $0x190] sm:$0xff]
        %v270 = vld [vmem:[#allocation3 + $0x198] sm:$0xff]
        %v271 = vld [vmem:[#allocation3 + $0x1a0] sm:$0xff]
        %v272 = vld [vmem:[#allocation3 + $0x1a8] sm:$0xff]
        %v273 = vld [vmem:[#allocation3 + $0x1b0] sm:$0xff]
        %v274 = vld [vmem:[#allocation3 + $0x1b8] sm:$0xff]
        %v275 = vld [vmem:[#allocation3 + $0x1c0] sm:$0xff]
        %v276 = vld [vmem:[#allocation3 + $0x1c8] sm:$0xff]
        %v277 = vld [vmem:[#allocation3 + $0x1d0] sm:$0xff]
        %v278 = vld [vmem:[#allocation3 + $0x1d8] sm:$0xff]
        %v279 = vld [vmem:[#allocation3 + $0x1e0] sm:$0xff]
        %v280 = vld [vmem:[#allocation3 + $0x1e8] sm:$0xff]
        %v281 = vld [vmem:[#allocation3 + $0x1f0] sm:$0xff]
        %v282 = vld [vmem:[#allocation3 + $0x1f8] sm:$0xff]
        %v283 = vld [vmem:[#allocation2 + $0x30] sm:$0xff]
        %v284 = vld [vmem:[#allocation2 + $0x38] sm:$0xff]
        %s285 = scalar_lea.vmem [#allocation3], 512
        %v286 = vld [vmem:[%s285] sm:$0xff]
        %v287 = vld [vmem:[%s285 + $0x8] sm:$0xff]
        %v288 = vld [vmem:[%s285 + $0x10] sm:$0xff]
        %v289 = vld [vmem:[%s285 + $0x18] sm:$0xff]
        %v290 = vld [vmem:[%s285 + $0x20] sm:$0xff]
        %v291 = vld [vmem:[%s285 + $0x28] sm:$0xff]
        %v292 = vld [vmem:[%s285 + $0x30] sm:$0xff]
        %v293 = vld [vmem:[%s285 + $0x38] sm:$0xff]
        %v294 = vld [vmem:[%s285 + $0x40] sm:$0xff]
        %v295 = vld [vmem:[%s285 + $0x48] sm:$0xff]
        %v296 = vld [vmem:[%s285 + $0x50] sm:$0xff]
        %v297 = vld [vmem:[%s285 + $0x58] sm:$0xff]
        %v298 = vld [vmem:[%s285 + $0x60] sm:$0xff]
        %v299 = vld [vmem:[%s285 + $0x68] sm:$0xff]
        %v300 = vld [vmem:[%s285 + $0x70] sm:$0xff]
        %v301 = vld [vmem:[%s285 + $0x78] sm:$0xff]
        %v302 = vld [vmem:[%s285 + $0x80] sm:$0xff]
        %v303 = vld [vmem:[%s285 + $0x88] sm:$0xff]
        %v304 = vld [vmem:[%s285 + $0x90] sm:$0xff]
        %v305 = vld [vmem:[%s285 + $0x98] sm:$0xff]
        %v306 = vld [vmem:[%s285 + $0xa0] sm:$0xff]
        %v307 = vld [vmem:[%s285 + $0xa8] sm:$0xff]
        %v308 = vld [vmem:[%s285 + $0xb0] sm:$0xff]
        %v309 = vld [vmem:[%s285 + $0xb8] sm:$0xff]
        %v310 = vld [vmem:[%s285 + $0xc0] sm:$0xff]
        %v311 = vld [vmem:[%s285 + $0xc8] sm:$0xff]
        %v312 = vld [vmem:[%s285 + $0xd0] sm:$0xff]
        %v313 = vld [vmem:[%s285 + $0xd8] sm:$0xff]
        %v314 = vld [vmem:[%s285 + $0xe0] sm:$0xff]
        %v315 = vld [vmem:[%s285 + $0xe8] sm:$0xff]
        %v316 = vld [vmem:[%s285 + $0xf0] sm:$0xff]
        %v317 = vld [vmem:[%s285 + $0xf8] sm:$0xff]
        %v318 = vld [vmem:[%s285 + $0x100] sm:$0xff]
        %v319 = vld [vmem:[%s285 + $0x108] sm:$0xff]
        %v320 = vld [vmem:[%s285 + $0x110] sm:$0xff]
        %v321 = vld [vmem:[%s285 + $0x118] sm:$0xff]
        %v322 = vld [vmem:[%s285 + $0x120] sm:$0xff]
        %v323 = vld [vmem:[%s285 + $0x128] sm:$0xff]
        %v324 = vld [vmem:[%s285 + $0x130] sm:$0xff]
        %v325 = vld [vmem:[%s285 + $0x138] sm:$0xff]
        %v326 = vld [vmem:[%s285 + $0x140] sm:$0xff]
        %v327 = vld [vmem:[%s285 + $0x148] sm:$0xff]
        %v328 = vld [vmem:[%s285 + $0x150] sm:$0xff]
        %v329 = vld [vmem:[%s285 + $0x158] sm:$0xff]
        %v330 = vld [vmem:[%s285 + $0x160] sm:$0xff]
        %v331 = vld [vmem:[%s285 + $0x168] sm:$0xff]
        %v332 = vld [vmem:[%s285 + $0x170] sm:$0xff]
        %v333 = vld [vmem:[%s285 + $0x178] sm:$0xff]
        %v334 = vld [vmem:[%s285 + $0x180] sm:$0xff]
        %v335 = vld [vmem:[%s285 + $0x188] sm:$0xff]
        %v336 = vld [vmem:[%s285 + $0x190] sm:$0xff]
        %v337 = vld [vmem:[%s285 + $0x198] sm:$0xff]
        %v338 = vld [vmem:[%s285 + $0x1a0] sm:$0xff]
        %v339 = vld [vmem:[%s285 + $0x1a8] sm:$0xff]
        %v340 = vld [vmem:[%s285 + $0x1b0] sm:$0xff]
        %v341 = vld [vmem:[%s285 + $0x1b8] sm:$0xff]
        %v342 = vld [vmem:[%s285 + $0x1c0] sm:$0xff]
        %v343 = vld [vmem:[%s285 + $0x1c8] sm:$0xff]
        %v344 = vld [vmem:[%s285 + $0x1d0] sm:$0xff]
        %v345 = vld [vmem:[%s285 + $0x1d8] sm:$0xff]
        %v346 = vld [vmem:[%s285 + $0x1e0] sm:$0xff]
        %v347 = vld [vmem:[%s285 + $0x1e8] sm:$0xff]
        %v348 = vld [vmem:[%s285 + $0x1f0] sm:$0xff]
        %v349 = vld [vmem:[%s285 + $0x1f8] sm:$0xff]
        %350 = vmatprep.subr.mxu0 %v287
        %351 = vmatpush1.msra.mxu0 %v286
        %352 = vmatprep.subr.mxu0 %v289
        %353 = vmatpush1.msra.mxu0 %v288
        %354 = vmatprep.subr.mxu0 %v291
        %355 = vmatpush1.msra.mxu0 %v290
        %356 = vmatprep.subr.mxu0 %v293
        %357 = vmatpush1.msra.mxu0 %v292
        %358 = vmatprep.subr.mxu0 %v295
        %359 = vmatpush1.msra.mxu0 %v294
        %360 = vmatprep.subr.mxu0 %v297
        %361 = vmatpush1.msra.mxu0 %v296
        %362 = vmatprep.subr.mxu0 %v299
        %363 = vmatpush1.msra.mxu0 %v298
        %364 = vmatprep.subr.mxu0 %v301
        %365 = vmatpush1.msra.mxu0 %v300
        %366 = vmatprep.subr.mxu0 %v303
        %367 = vmatpush1.msra.mxu0 %v302
        %368 = vmatprep.subr.mxu0 %v305
        %369 = vmatpush1.msra.mxu0 %v304
        %370 = vmatprep.subr.mxu0 %v307
        %371 = vmatpush1.msra.mxu0 %v306
        %372 = vmatprep.subr.mxu0 %v309
        %373 = vmatpush1.msra.mxu0 %v308
        %374 = vmatprep.subr.mxu0 %v311
        %375 = vmatpush1.msra.mxu0 %v310
        %376 = vmatprep.subr.mxu0 %v313
        %377 = vmatpush1.msra.mxu0 %v312
        %378 = vmatprep.subr.mxu0 %v315
        %379 = vmatpush1.msra.mxu0 %v314
        %380 = vmatprep.subr.mxu0 %v317
        %381 = vmatpush1.msra.mxu0 %v316
        %382 = vmatprep.subr.mxu0 %v319
        %383 = vmatpush1.msra.mxu0 %v318
        %384 = vmatprep.subr.mxu0 %v321
        %385 = vmatpush1.msra.mxu0 %v320
        %386 = vmatprep.subr.mxu0 %v323
        %387 = vmatpush1.msra.mxu0 %v322
        %388 = vmatprep.subr.mxu0 %v325
        %389 = vmatpush1.msra.mxu0 %v324
        %390 = vmatprep.subr.mxu0 %v327
        %391 = vmatpush1.msra.mxu0 %v326
        %392 = vmatprep.subr.mxu0 %v329
        %393 = vmatpush1.msra.mxu0 %v328
        %394 = vmatprep.subr.mxu0 %v331
        %395 = vmatpush1.msra.mxu0 %v330
        %396 = vmatprep.subr.mxu0 %v333
        %397 = vmatpush1.msra.mxu0 %v332
        %398 = vmatprep.subr.mxu0 %v335
        %399 = vmatpush1.msra.mxu0 %v334
        %400 = vmatprep.subr.mxu0 %v337
        %401 = vmatpush1.msra.mxu0 %v336
        %402 = vmatprep.subr.mxu0 %v339
        %403 = vmatpush1.msra.mxu0 %v338
        %404 = vmatprep.subr.mxu0 %v341
        %405 = vmatpush1.msra.mxu0 %v340
        %406 = vmatprep.subr.mxu0 %v343
        %407 = vmatpush1.msra.mxu0 %v342
        %408 = vmatprep.subr.mxu0 %v345
        %409 = vmatpush1.msra.mxu0 %v344
        %410 = vmatprep.subr.mxu0 %v347
        %411 = vmatpush1.msra.mxu0 %v346
        %412 = vmatprep.subr.mxu0 %v349
        %413 = vmatpush1.msra.mxu0 %v348
        %414 = vmatprep.mubr.f32.mxu0 %v216
        %415 = vmatmul.mubr.f32.gmra.mrb[0].mxu0 %v215
        %v416 = vpop.f32.mrb[0].mxu0
        %v417 = vadd.f32 0.0, %v416
        %v418 = vpop.f32.mrb[0].mxu0
        %v419 = vadd.f32 0.0, %v418
        %420 = vmatprep.mubr.f32.mxu0 %v284
        %421 = vmatmul.mubr.f32.gmra.mrb[0].mxu0 %v283
        %v422 = vpop.f32.mrb[0].mxu0
        %v423 = vadd.f32 0.0, %v422
        %v424 = vpop.f32.mrb[0].mxu0
        %v425 = vadd.f32 0.0, %v424
        %426 = vdwg.mxu0
        %vm433 = vcmask 1040384
        %v434 = vrot.slane %v213, 7
        %v435 = vrot.slane %v215, 7
        %v436 = vsel %vm433, %v434, %v435
        %v437 = vrot.slane %v214, 7
        %v438 = vrot.slane %v216, 7
        %v439 = vsel %vm433, %v437, %v438
        %v440 = vrot.slane %v217, 7
        %v441 = vsel %vm433, %v435, %v440
        %v442 = vrot.slane %v218, 7
        %v443 = vsel %vm433, %v438, %v442
        %448 = vmatprep.subr.mxu0 %v220
        %449 = vmatpush1.msra.mxu0 %v219
        %450 = vmatprep.subr.mxu0 %v222
        %451 = vmatpush1.msra.mxu0 %v221
        %452 = vmatprep.subr.mxu0 %v224
        %453 = vmatpush1.msra.mxu0 %v223
        %454 = vmatprep.subr.mxu0 %v226
        %455 = vmatpush1.msra.mxu0 %v225
        %456 = vmatprep.subr.mxu0 %v228
        %457 = vmatpush1.msra.mxu0 %v227
        %458 = vmatprep.subr.mxu0 %v230
        %459 = vmatpush1.msra.mxu0 %v229
        %460 = vmatprep.subr.mxu0 %v232
        %461 = vmatpush1.msra.mxu0 %v231
        %462 = vmatprep.subr.mxu0 %v234
        %463 = vmatpush1.msra.mxu0 %v233
        %464 = vmatprep.subr.mxu0 %v236
        %465 = vmatpush1.msra.mxu0 %v235
        %466 = vmatprep.subr.mxu0 %v238
        %467 = vmatpush1.msra.mxu0 %v237
        %468 = vmatprep.subr.mxu0 %v240
        %469 = vmatpush1.msra.mxu0 %v239
        %470 = vmatprep.subr.mxu0 %v242
        %471 = vmatpush1.msra.mxu0 %v241
        %472 = vmatprep.subr.mxu0 %v244
        %473 = vmatpush1.msra.mxu0 %v243
        %474 = vmatprep.subr.mxu0 %v246
        %475 = vmatpush1.msra.mxu0 %v245
        %476 = vmatprep.subr.mxu0 %v248
        %477 = vmatpush1.msra.mxu0 %v247
        %478 = vmatprep.subr.mxu0 %v250
        %479 = vmatpush1.msra.mxu0 %v249
        %480 = vmatprep.subr.mxu0 %v252
        %481 = vmatpush1.msra.mxu0 %v251
        %482 = vmatprep.subr.mxu0 %v254
        %483 = vmatpush1.msra.mxu0 %v253
        %484 = vmatprep.subr.mxu0 %v256
        %485 = vmatpush1.msra.mxu0 %v255
        %486 = vmatprep.subr.mxu0 %v258
        %487 = vmatpush1.msra.mxu0 %v257
        %488 = vmatprep.subr.mxu0 %v260
        %489 = vmatpush1.msra.mxu0 %v259
        %490 = vmatprep.subr.mxu0 %v262
        %491 = vmatpush1.msra.mxu0 %v261
        %492 = vmatprep.subr.mxu0 %v264
        %493 = vmatpush1.msra.mxu0 %v263
        %494 = vmatprep.subr.mxu0 %v266
        %495 = vmatpush1.msra.mxu0 %v265
        %496 = vmatprep.subr.mxu0 %v268
        %497 = vmatpush1.msra.mxu0 %v267
        %498 = vmatprep.subr.mxu0 %v270
        %499 = vmatpush1.msra.mxu0 %v269
        %500 = vmatprep.subr.mxu0 %v272
        %501 = vmatpush1.msra.mxu0 %v271
        %502 = vmatprep.subr.mxu0 %v274
        %503 = vmatpush1.msra.mxu0 %v273
        %504 = vmatprep.subr.mxu0 %v276
        %505 = vmatpush1.msra.mxu0 %v275
        %506 = vmatprep.subr.mxu0 %v278
        %507 = vmatpush1.msra.mxu0 %v277
        %508 = vmatprep.subr.mxu0 %v280
        %509 = vmatpush1.msra.mxu0 %v279
        %510 = vmatprep.subr.mxu0 %v282
        %511 = vmatpush1.msra.mxu0 %v281
        %512 = vmatprep.mubr.f32.mxu0 %v439
        %513 = vmatmul.mubr.f32.gmra.mrb[0].mxu0 %v436
        %v514 = vpop.f32.mrb[0].mxu0
        %v515 = vadd.f32 %v417, %v514
        %v516 = vpop.f32.mrb[0].mxu0
        %v517 = vadd.f32 %v419, %v516
        %518 = vmatprep.mubr.f32.mxu0 %v443
        %519 = vmatmul.mubr.f32.gmra.mrb[0].mxu0 %v441
        %v520 = vpop.f32.mrb[0].mxu0
        %v521 = vadd.f32 %v423, %v520
        %v522 = vpop.f32.mrb[0].mxu0
        %v523 = vadd.f32 %v425, %v522
        %524 = vdwg.mxu0
        %v525 = vld [vmem:[#allocation5] sm:$0xff]
        %v527 = vlaneseq
        %v528 = vshrl.u32 %v527, 7
        %v529 = vsub.s32 0, %v528
        %v530 = vrot.slane %v525, %v529
        %v531 = vlaneseq
        %v532 = vshrl.u32 %v531, 7
        %v533 = vsub.s32 4, %v532
        %v534 = vrot.slane %v525, %v533
        %v537 = vlaneseq
        %v538 = vshrl.u32 %v537, 7
        %v539 = vsub.s32 0, %v538
        %v540 = vrot.slane %v530, %v539
        %v541 = vlaneseq
        %v542 = vshrl.u32 %v541, 7
        %v543 = vsub.s32 0, %v542
        %v544 = vrot.slane %v534, %v543
        %v545 = vadd.f32 %v515, %v540
        %v546 = vadd.f32 %v517, %v544
        %v547 = vadd.f32 %v521, %v540
        %v548 = vadd.f32 %v523, %v544
        %v549 = vadd.f32 %v545, %v546
        %550 = vadd.xlane.f32.xlu0 %v549
        %v551 = vpop.xlane.xlu0 %550
        %v552 = vadd.f32 %v547, %v548
        %553 = vadd.xlane.f32.xlu0 %v552
        %v554 = vpop.xlane.xlu0 %553
        %v555 = vrcp.pop 256.0
        %v556 = vmul.f32 %v551, %v555
        %v557 = vmul.f32 %v554, %v555
        %v558 = vsub.f32 %v545, %v556
        %v559 = vsub.f32 %v546, %v556
        %v560 = vsub.f32 %v547, %v557
        %v561 = vsub.f32 %v548, %v557
        %v562 = vmul.f32 %v558, %v558
        %v563 = vmul.f32 %v559, %v559
        %v564 = vmul.f32 %v560, %v560
        %v565 = vmul.f32 %v561, %v561
        %v566 = vadd.f32 %v562, %v563
        %567 = vadd.xlane.f32.xlu0 %v566
        %v568 = vpop.xlane.xlu0 %567
        %v569 = vadd.f32 %v564, %v565
        %570 = vadd.xlane.f32.xlu0 %v569
        %v571 = vpop.xlane.xlu0 %570
        %v572 = vmul.f32 %v568, %v555
        %v573 = vmul.f32 %v571, %v555
        %v574 = vadd.f32 %v572, 1e-05
        %v575 = vadd.f32 %v573, 1e-05
        %v576 = vrsqrt.pop %v574
        %v577 = vrsqrt.pop %v575
        %v578 = vmul.f32 %v558, %v576
        %v579 = vmul.f32 %v559, %v576
        %v580 = vmul.f32 %v560, %v577
        %v581 = vmul.f32 %v561, %v577
        %v582 = vlaneseq
        %v583 = vshrl.u32 %v582, 7
        %v584 = vsub.s32 1, %v583
        %v585 = vrot.slane %v525, %v584
        %v586 = vlaneseq
        %v587 = vshrl.u32 %v586, 7
        %v588 = vsub.s32 5, %v587
        %v589 = vrot.slane %v525, %v588
        %v592 = vlaneseq
        %v593 = vshrl.u32 %v592, 7
        %v594 = vsub.s32 1, %v593
        %v595 = vrot.slane %v585, %v594
        %v596 = vlaneseq
        %v597 = vshrl.u32 %v596, 7
        %v598 = vsub.s32 1, %v597
        %v599 = vrot.slane %v589, %v598
        %v600 = vmul.f32 %v578, %v595
        %v601 = vmul.f32 %v579, %v599
        %v602 = vmul.f32 %v580, %v595
        %v603 = vmul.f32 %v581, %v599
        %v604 = vlaneseq
        %v605 = vshrl.u32 %v604, 7
        %v606 = vsub.s32 2, %v605
        %v607 = vrot.slane %v525, %v606
        %v608 = vlaneseq
        %v609 = vshrl.u32 %v608, 7
        %v610 = vsub.s32 6, %v609
        %v611 = vrot.slane %v525, %v610
        %v614 = vlaneseq
        %v615 = vshrl.u32 %v614, 7
        %v616 = vsub.s32 2, %v615
        %v617 = vrot.slane %v607, %v616
        %v618 = vlaneseq
        %v619 = vshrl.u32 %v618, 7
        %v620 = vsub.s32 2, %v619
        %v621 = vrot.slane %v611, %v620
        %v622 = vadd.f32 %v600, %v617
        %v623 = vadd.f32 %v601, %v621
        %v624 = vadd.f32 %v602, %v617
        %v625 = vadd.f32 %v603, %v621
        %vm626 = vcmp.gt.f32.partialorder %v622, 0.0
        %vm627 = vcmp.gt.f32.partialorder %v623, 0.0
        %vm628 = vcmp.gt.f32.partialorder %v624, 0.0
        %vm629 = vcmp.gt.f32.partialorder %v625, 0.0
        %v630 = vlaneseq
        %v631 = vshrl.u32 %v630, 7
        %v632 = vsub.s32 3, %v631
        %v633 = vrot.slane %v525, %v632
        %v634 = vlaneseq
        %v635 = vshrl.u32 %v634, 7
        %v636 = vsub.s32 7, %v635
        %v637 = vrot.slane %v525, %v636
        %v640 = vlaneseq
        %v641 = vshrl.u32 %v640, 7
        %v642 = vsub.s32 3, %v641
        %v643 = vrot.slane %v633, %v642
        %v644 = vlaneseq
        %v645 = vshrl.u32 %v644, 7
        %v646 = vsub.s32 3, %v645
        %v647 = vrot.slane %v637, %v646
        %v648 = vmul.f32 %v643, %v622
        %v649 = vmul.f32 %v647, %v623
        %v650 = vmul.f32 %v643, %v624
        %v651 = vmul.f32 %v647, %v625
        %v652 = vsel %vm626, %v622, %v648
        %v653 = vsel %vm627, %v623, %v649
        %v654 = vsel %vm628, %v624, %v650
        %v655 = vsel %vm629, %v625, %v651
        %656 = vst [vmem:[#allocation2 + $0x20] sm:$0xff] %v652
        %657 = vst [vmem:[#allocation2 + $0x28] sm:$0xff] %v653
        %658 = vst [vmem:[#allocation2 + $0x30] sm:$0xff] %v654
        %659 = vst [vmem:[#allocation2 + $0x38] sm:$0xff] %v655
        %v660 = vld [vmem:[#allocation2 + $0x10] sm:$0xc0]
        %v661 = vld [vmem:[#allocation2 + $0x18] sm:$0xc0]
        %v662 = vld [vmem:[#allocation2 + $0x20] sm:$0xff]
        %v663 = vld [vmem:[#allocation2 + $0x28] sm:$0xff]
        %v664 = vld [vmem:[#allocation2 + $0x30] sm:$0x3f]
        %v665 = vld [vmem:[#allocation2 + $0x38] sm:$0x3f]
        %s666 = scalar_lea.vmem [#allocation3], 1024
        %v667 = vld [vmem:[%s666] sm:$0xff]
        %v668 = vld [vmem:[%s666 + $0x8] sm:$0xff]
        %v669 = vld [vmem:[%s666 + $0x10] sm:$0xff]
        %v670 = vld [vmem:[%s666 + $0x18] sm:$0xff]
        %v671 = vld [vmem:[%s666 + $0x20] sm:$0xff]
        %v672 = vld [vmem:[%s666 + $0x28] sm:$0xff]
        %v673 = vld [vmem:[%s666 + $0x30] sm:$0xff]
        %v674 = vld [vmem:[%s666 + $0x38] sm:$0xff]
        %v675 = vld [vmem:[%s666 + $0x40] sm:$0xff]
        %v676 = vld [vmem:[%s666 + $0x48] sm:$0xff]
        %v677 = vld [vmem:[%s666 + $0x50] sm:$0xff]
        %v678 = vld [vmem:[%s666 + $0x58] sm:$0xff]
        %v679 = vld [vmem:[%s666 + $0x60] sm:$0xff]
        %v680 = vld [vmem:[%s666 + $0x68] sm:$0xff]
        %v681 = vld [vmem:[%s666 + $0x70] sm:$0xff]
        %v682 = vld [vmem:[%s666 + $0x78] sm:$0xff]
        %v683 = vld [vmem:[%s666 + $0x80] sm:$0xff]
        %v684 = vld [vmem:[%s666 + $0x88] sm:$0xff]
        %v685 = vld [vmem:[%s666 + $0x90] sm:$0xff]
        %v686 = vld [vmem:[%s666 + $0x98] sm:$0xff]
        %v687 = vld [vmem:[%s666 + $0xa0] sm:$0xff]
        %v688 = vld [vmem:[%s666 + $0xa8] sm:$0xff]
        %v689 = vld [vmem:[%s666 + $0xb0] sm:$0xff]
        %v690 = vld [vmem:[%s666 + $0xb8] sm:$0xff]
        %v691 = vld [vmem:[%s666 + $0xc0] sm:$0xff]
        %v692 = vld [vmem:[%s666 + $0xc8] sm:$0xff]
        %v693 = vld [vmem:[%s666 + $0xd0] sm:$0xff]
        %v694 = vld [vmem:[%s666 + $0xd8] sm:$0xff]
        %v695 = vld [vmem:[%s666 + $0xe0] sm:$0xff]
        %v696 = vld [vmem:[%s666 + $0xe8] sm:$0xff]
        %v697 = vld [vmem:[%s666 + $0xf0] sm:$0xff]
        %v698 = vld [vmem:[%s666 + $0xf8] sm:$0xff]
        %v699 = vld [vmem:[%s666 + $0x100] sm:$0xff]
        %v700 = vld [vmem:[%s666 + $0x108] sm:$0xff]
        %v701 = vld [vmem:[%s666 + $0x110] sm:$0xff]
        %v702 = vld [vmem:[%s666 + $0x118] sm:$0xff]
        %v703 = vld [vmem:[%s666 + $0x120] sm:$0xff]
        %v704 = vld [vmem:[%s666 + $0x128] sm:$0xff]
        %v705 = vld [vmem:[%s666 + $0x130] sm:$0xff]
        %v706 = vld [vmem:[%s666 + $0x138] sm:$0xff]
        %v707 = vld [vmem:[%s666 + $0x140] sm:$0xff]
        %v708 = vld [vmem:[%s666 + $0x148] sm:$0xff]
        %v709 = vld [vmem:[%s666 + $0x150] sm:$0xff]
        %v710 = vld [vmem:[%s666 + $0x158] sm:$0xff]
        %v711 = vld [vmem:[%s666 + $0x160] sm:$0xff]
        %v712 = vld [vmem:[%s666 + $0x168] sm:$0xff]
        %v713 = vld [vmem:[%s666 + $0x170] sm:$0xff]
        %v714 = vld [vmem:[%s666 + $0x178] sm:$0xff]
        %v715 = vld [vmem:[%s666 + $0x180] sm:$0xff]
        %v716 = vld [vmem:[%s666 + $0x188] sm:$0xff]
        %v717 = vld [vmem:[%s666 + $0x190] sm:$0xff]
        %v718 = vld [vmem:[%s666 + $0x198] sm:$0xff]
        %v719 = vld [vmem:[%s666 + $0x1a0] sm:$0xff]
        %v720 = vld [vmem:[%s666 + $0x1a8] sm:$0xff]
        %v721 = vld [vmem:[%s666 + $0x1b0] sm:$0xff]
        %v722 = vld [vmem:[%s666 + $0x1b8] sm:$0xff]
        %v723 = vld [vmem:[%s666 + $0x1c0] sm:$0xff]
        %v724 = vld [vmem:[%s666 + $0x1c8] sm:$0xff]
        %v725 = vld [vmem:[%s666 + $0x1d0] sm:$0xff]
        %v726 = vld [vmem:[%s666 + $0x1d8] sm:$0xff]
        %v727 = vld [vmem:[%s666 + $0x1e0] sm:$0xff]
        %v728 = vld [vmem:[%s666 + $0x1e8] sm:$0xff]
        %v729 = vld [vmem:[%s666 + $0x1f0] sm:$0xff]
        %v730 = vld [vmem:[%s666 + $0x1f8] sm:$0xff]
        %v731 = vld [vmem:[#allocation2 + $0x30] sm:$0xff]
        %v732 = vld [vmem:[#allocation2 + $0x38] sm:$0xff]
        %s733 = scalar_lea.vmem [#allocation3], 1536
        %v734 = vld [vmem:[%s733] sm:$0xff]
        %v735 = vld [vmem:[%s733 + $0x8] sm:$0xff]
        %v736 = vld [vmem:[%s733 + $0x10] sm:$0xff]
        %v737 = vld [vmem:[%s733 + $0x18] sm:$0xff]
        %v738 = vld [vmem:[%s733 + $0x20] sm:$0xff]
        %v739 = vld [vmem:[%s733 + $0x28] sm:$0xff]
        %v740 = vld [vmem:[%s733 + $0x30] sm:$0xff]
        %v741 = vld [vmem:[%s733 + $0x38] sm:$0xff]
        %v742 = vld [vmem:[%s733 + $0x40] sm:$0xff]
        %v743 = vld [vmem:[%s733 + $0x48] sm:$0xff]
        %v744 = vld [vmem:[%s733 + $0x50] sm:$0xff]
        %v745 = vld [vmem:[%s733 + $0x58] sm:$0xff]
        %v746 = vld [vmem:[%s733 + $0x60] sm:$0xff]
        %v747 = vld [vmem:[%s733 + $0x68] sm:$0xff]
        %v748 = vld [vmem:[%s733 + $0x70] sm:$0xff]
        %v749 = vld [vmem:[%s733 + $0x78] sm:$0xff]
        %v750 = vld [vmem:[%s733 + $0x80] sm:$0xff]
        %v751 = vld [vmem:[%s733 + $0x88] sm:$0xff]
        %v752 = vld [vmem:[%s733 + $0x90] sm:$0xff]
        %v753 = vld [vmem:[%s733 + $0x98] sm:$0xff]
        %v754 = vld [vmem:[%s733 + $0xa0] sm:$0xff]
        %v755 = vld [vmem:[%s733 + $0xa8] sm:$0xff]
        %v756 = vld [vmem:[%s733 + $0xb0] sm:$0xff]
        %v757 = vld [vmem:[%s733 + $0xb8] sm:$0xff]
        %v758 = vld [vmem:[%s733 + $0xc0] sm:$0xff]
        %v759 = vld [vmem:[%s733 + $0xc8] sm:$0xff]
        %v760 = vld [vmem:[%s733 + $0xd0] sm:$0xff]
        %v761 = vld [vmem:[%s733 + $0xd8] sm:$0xff]
        %v762 = vld [vmem:[%s733 + $0xe0] sm:$0xff]
        %v763 = vld [vmem:[%s733 + $0xe8] sm:$0xff]
        %v764 = vld [vmem:[%s733 + $0xf0] sm:$0xff]
        %v765 = vld [vmem:[%s733 + $0xf8] sm:$0xff]
        %v766 = vld [vmem:[%s733 + $0x100] sm:$0xff]
        %v767 = vld [vmem:[%s733 + $0x108] sm:$0xff]
        %v768 = vld [vmem:[%s733 + $0x110] sm:$0xff]
        %v769 = vld [vmem:[%s733 + $0x118] sm:$0xff]
        %v770 = vld [vmem:[%s733 + $0x120] sm:$0xff]
        %v771 = vld [vmem:[%s733 + $0x128] sm:$0xff]
        %v772 = vld [vmem:[%s733 + $0x130] sm:$0xff]
        %v773 = vld [vmem:[%s733 + $0x138] sm:$0xff]
        %v774 = vld [vmem:[%s733 + $0x140] sm:$0xff]
        %v775 = vld [vmem:[%s733 + $0x148] sm:$0xff]
        %v776 = vld [vmem:[%s733 + $0x150] sm:$0xff]
        %v777 = vld [vmem:[%s733 + $0x158] sm:$0xff]
        %v778 = vld [vmem:[%s733 + $0x160] sm:$0xff]
        %v779 = vld [vmem:[%s733 + $0x168] sm:$0xff]
        %v780 = vld [vmem:[%s733 + $0x170] sm:$0xff]
        %v781 = vld [vmem:[%s733 + $0x178] sm:$0xff]
        %v782 = vld [vmem:[%s733 + $0x180] sm:$0xff]
        %v783 = vld [vmem:[%s733 + $0x188] sm:$0xff]
        %v784 = vld [vmem:[%s733 + $0x190] sm:$0xff]
        %v785 = vld [vmem:[%s733 + $0x198] sm:$0xff]
        %v786 = vld [vmem:[%s733 + $0x1a0] sm:$0xff]
        %v787 = vld [vmem:[%s733 + $0x1a8] sm:$0xff]
        %v788 = vld [vmem:[%s733 + $0x1b0] sm:$0xff]
        %v789 = vld [vmem:[%s733 + $0x1b8] sm:$0xff]
        %v790 = vld [vmem:[%s733 + $0x1c0] sm:$0xff]
        %v791 = vld [vmem:[%s733 + $0x1c8] sm:$0xff]
        %v792 = vld [vmem:[%s733 + $0x1d0] sm:$0xff]
        %v793 = vld [vmem:[%s733 + $0x1d8] sm:$0xff]
        %v794 = vld [vmem:[%s733 + $0x1e0] sm:$0xff]
        %v795 = vld [vmem:[%s733 + $0x1e8] sm:$0xff]
        %v796 = vld [vmem:[%s733 + $0x1f0] sm:$0xff]
        %v797 = vld [vmem:[%s733 + $0x1f8] sm:$0xff]
        %798 = vmatprep.subr.mxu0 %v735
        %799 = vmatpush1.msra.mxu0 %v734
        %800 = vmatprep.subr.mxu0 %v737
        %801 = vmatpush1.msra.mxu0 %v736
        %802 = vmatprep.subr.mxu0 %v739
        %803 = vmatpush1.msra.mxu0 %v738
        %804 = vmatprep.subr.mxu0 %v741
        %805 = vmatpush1.msra.mxu0 %v740
        %806 = vmatprep.subr.mxu0 %v743
        %807 = vmatpush1.msra.mxu0 %v742
        %808 = vmatprep.subr.mxu0 %v745
        %809 = vmatpush1.msra.mxu0 %v744
        %810 = vmatprep.subr.mxu0 %v747
        %811 = vmatpush1.msra.mxu0 %v746
        %812 = vmatprep.subr.mxu0 %v749
        %813 = vmatpush1.msra.mxu0 %v748
        %814 = vmatprep.subr.mxu0 %v751
        %815 = vmatpush1.msra.mxu0 %v750
        %816 = vmatprep.subr.mxu0 %v753
        %817 = vmatpush1.msra.mxu0 %v752
        %818 = vmatprep.subr.mxu0 %v755
        %819 = vmatpush1.msra.mxu0 %v754
        %820 = vmatprep.subr.mxu0 %v757
        %821 = vmatpush1.msra.mxu0 %v756
        %822 = vmatprep.subr.mxu0 %v759
        %823 = vmatpush1.msra.mxu0 %v758
        %824 = vmatprep.subr.mxu0 %v761
        %825 = vmatpush1.msra.mxu0 %v760
        %826 = vmatprep.subr.mxu0 %v763
        %827 = vmatpush1.msra.mxu0 %v762
        %828 = vmatprep.subr.mxu0 %v765
        %829 = vmatpush1.msra.mxu0 %v764
        %830 = vmatprep.subr.mxu0 %v767
        %831 = vmatpush1.msra.mxu0 %v766
        %832 = vmatprep.subr.mxu0 %v769
        %833 = vmatpush1.msra.mxu0 %v768
        %834 = vmatprep.subr.mxu0 %v771
        %835 = vmatpush1.msra.mxu0 %v770
        %836 = vmatprep.subr.mxu0 %v773
        %837 = vmatpush1.msra.mxu0 %v772
        %838 = vmatprep.subr.mxu0 %v775
        %839 = vmatpush1.msra.mxu0 %v774
        %840 = vmatprep.subr.mxu0 %v777
        %841 = vmatpush1.msra.mxu0 %v776
        %842 = vmatprep.subr.mxu0 %v779
        %843 = vmatpush1.msra.mxu0 %v778
        %844 = vmatprep.subr.mxu0 %v781
        %845 = vmatpush1.msra.mxu0 %v780
        %846 = vmatprep.subr.mxu0 %v783
        %847 = vmatpush1.msra.mxu0 %v782
        %848 = vmatprep.subr.mxu0 %v785
        %849 = vmatpush1.msra.mxu0 %v784
        %850 = vmatprep.subr.mxu0 %v787
        %851 = vmatpush1.msra.mxu0 %v786
        %852 = vmatprep.subr.mxu0 %v789
        %853 = vmatpush1.msra.mxu0 %v788
        %854 = vmatprep.subr.mxu0 %v791
        %855 = vmatpush1.msra.mxu0 %v790
        %856 = vmatprep.subr.mxu0 %v793
        %857 = vmatpush1.msra.mxu0 %v792
        %858 = vmatprep.subr.mxu0 %v795
        %859 = vmatpush1.msra.mxu0 %v794
        %860 = vmatprep.subr.mxu0 %v797
        %861 = vmatpush1.msra.mxu0 %v796
        %862 = vmatprep.mubr.f32.mxu0 %v663
        %863 = vmatmul.mubr.f32.gmra.mrb[0].mxu0 %v662
        %v864 = vpop.f32.mrb[0].mxu0
        %v865 = vadd.f32 0.0, %v864
        %v866 = vpop.f32.mrb[0].mxu0
        %v867 = vadd.f32 0.0, %v866
        %868 = vmatprep.mubr.f32.mxu0 %v732
        %869 = vmatmul.mubr.f32.gmra.mrb[0].mxu0 %v731
        %v870 = vpop.f32.mrb[0].mxu0
        %v871 = vadd.f32 0.0, %v870
        %v872 = vpop.f32.mrb[0].mxu0
        %v873 = vadd.f32 0.0, %v872
        %874 = vdwg.mxu0
        %vm881 = vcmask 1041408
        %v882 = vrot.slane %v660, 6
        %v883 = vrot.slane %v662, 6
        %v884 = vsel %vm881, %v882, %v883
        %v885 = vrot.slane %v661, 6
        %v886 = vrot.slane %v663, 6
        %v887 = vsel %vm881, %v885, %v886
        %v888 = vrot.slane %v664, 6
        %v889 = vsel %vm881, %v883, %v888
        %v890 = vrot.slane %v665, 6
        %v891 = vsel %vm881, %v886, %v890
        %896 = vmatprep.subr.mxu0 %v668
        %897 = vmatpush1.msra.mxu0 %v667
        %898 = vmatprep.subr.mxu0 %v670
        %899 = vmatpush1.msra.mxu0 %v669
        %900 = vmatprep.subr.mxu0 %v672
        %901 = vmatpush1.msra.mxu0 %v671
        %902 = vmatprep.subr.mxu0 %v674
        %903 = vmatpush1.msra.mxu0 %v673
        %904 = vmatprep.subr.mxu0 %v676
        %905 = vmatpush1.msra.mxu0 %v675
        %906 = vmatprep.subr.mxu0 %v678
        %907 = vmatpush1.msra.mxu0 %v677
        %908 = vmatprep.subr.mxu0 %v680
        %909 = vmatpush1.msra.mxu0 %v679
        %910 = vmatprep.subr.mxu0 %v682
        %911 = vmatpush1.msra.mxu0 %v681
        %912 = vmatprep.subr.mxu0 %v684
        %913 = vmatpush1.msra.mxu0 %v683
        %914 = vmatprep.subr.mxu0 %v686
        %915 = vmatpush1.msra.mxu0 %v685
        %916 = vmatprep.subr.mxu0 %v688
        %917 = vmatpush1.msra.mxu0 %v687
        %918 = vmatprep.subr.mxu0 %v690
        %919 = vmatpush1.msra.mxu0 %v689
        %920 = vmatprep.subr.mxu0 %v692
        %921 = vmatpush1.msra.mxu0 %v691
        %922 = vmatprep.subr.mxu0 %v694
        %923 = vmatpush1.msra.mxu0 %v693
        %924 = vmatprep.subr.mxu0 %v696
        %925 = vmatpush1.msra.mxu0 %v695
        %926 = vmatprep.subr.mxu0 %v698
        %927 = vmatpush1.msra.mxu0 %v697
        %928 = vmatprep.subr.mxu0 %v700
        %929 = vmatpush1.msra.mxu0 %v699
        %930 = vmatprep.subr.mxu0 %v702
        %931 = vmatpush1.msra.mxu0 %v701
        %932 = vmatprep.subr.mxu0 %v704
        %933 = vmatpush1.msra.mxu0 %v703
        %934 = vmatprep.subr.mxu0 %v706
        %935 = vmatpush1.msra.mxu0 %v705
        %936 = vmatprep.subr.mxu0 %v708
        %937 = vmatpush1.msra.mxu0 %v707
        %938 = vmatprep.subr.mxu0 %v710
        %939 = vmatpush1.msra.mxu0 %v709
        %940 = vmatprep.subr.mxu0 %v712
        %941 = vmatpush1.msra.mxu0 %v711
        %942 = vmatprep.subr.mxu0 %v714
        %943 = vmatpush1.msra.mxu0 %v713
        %944 = vmatprep.subr.mxu0 %v716
        %945 = vmatpush1.msra.mxu0 %v715
        %946 = vmatprep.subr.mxu0 %v718
        %947 = vmatpush1.msra.mxu0 %v717
        %948 = vmatprep.subr.mxu0 %v720
        %949 = vmatpush1.msra.mxu0 %v719
        %950 = vmatprep.subr.mxu0 %v722
        %951 = vmatpush1.msra.mxu0 %v721
        %952 = vmatprep.subr.mxu0 %v724
        %953 = vmatpush1.msra.mxu0 %v723
        %954 = vmatprep.subr.mxu0 %v726
        %955 = vmatpush1.msra.mxu0 %v725
        %956 = vmatprep.subr.mxu0 %v728
        %957 = vmatpush1.msra.mxu0 %v727
        %958 = vmatprep.subr.mxu0 %v730
        %959 = vmatpush1.msra.mxu0 %v729
        %960 = vmatprep.mubr.f32.mxu0 %v887
        %961 = vmatmul.mubr.f32.gmra.mrb[0].mxu0 %v884
        %v962 = vpop.f32.mrb[0].mxu0
        %v963 = vadd.f32 %v865, %v962
        %v964 = vpop.f32.mrb[0].mxu0
        %v965 = vadd.f32 %v867, %v964
        %966 = vmatprep.mubr.f32.mxu0 %v891
        %967 = vmatmul.mubr.f32.gmra.mrb[0].mxu0 %v889
        %v968 = vpop.f32.mrb[0].mxu0
        %v969 = vadd.f32 %v871, %v968
        %v970 = vpop.f32.mrb[0].mxu0
        %v971 = vadd.f32 %v873, %v970
        %972 = vdwg.mxu0
        %s973 = scalar_lea.vmem [#allocation5], 8
        %v974 = vld [vmem:[%s973] sm:$0xff]
        %v976 = vlaneseq
        %v977 = vshrl.u32 %v976, 7
        %v978 = vsub.s32 0, %v977
        %v979 = vrot.slane %v974, %v978
        %v980 = vlaneseq
        %v981 = vshrl.u32 %v980, 7
        %v982 = vsub.s32 4, %v981
        %v983 = vrot.slane %v974, %v982
        %v986 = vlaneseq
        %v987 = vshrl.u32 %v986, 7
        %v988 = vsub.s32 0, %v987
        %v989 = vrot.slane %v979, %v988
        %v990 = vlaneseq
        %v991 = vshrl.u32 %v990, 7
        %v992 = vsub.s32 0, %v991
        %v993 = vrot.slane %v983, %v992
        %v994 = vadd.f32 %v963, %v989
        %v995 = vadd.f32 %v965, %v993
        %v996 = vadd.f32 %v969, %v989
        %v997 = vadd.f32 %v971, %v993
        %v998 = vadd.f32 %v994, %v995
        %999 = vadd.xlane.f32.xlu0 %v998
        %v1000 = vpop.xlane.xlu0 %999
        %v1001 = vadd.f32 %v996, %v997
        %1002 = vadd.xlane.f32.xlu0 %v1001
        %v1003 = vpop.xlane.xlu0 %1002
        %v1004 = vmul.f32 %v1000, %v555
        %v1005 = vmul.f32 %v1003, %v555
        %v1006 = vsub.f32 %v994, %v1004
        %v1007 = vsub.f32 %v995, %v1004
        %v1008 = vsub.f32 %v996, %v1005
        %v1009 = vsub.f32 %v997, %v1005
        %v1010 = vmul.f32 %v1006, %v1006
        %v1011 = vmul.f32 %v1007, %v1007
        %v1012 = vmul.f32 %v1008, %v1008
        %v1013 = vmul.f32 %v1009, %v1009
        %v1014 = vadd.f32 %v1010, %v1011
        %1015 = vadd.xlane.f32.xlu0 %v1014
        %v1016 = vpop.xlane.xlu0 %1015
        %v1017 = vadd.f32 %v1012, %v1013
        %1018 = vadd.xlane.f32.xlu0 %v1017
        %v1019 = vpop.xlane.xlu0 %1018
        %v1020 = vmul.f32 %v1016, %v555
        %v1021 = vmul.f32 %v1019, %v555
        %v1022 = vadd.f32 %v1020, 1e-05
        %v1023 = vadd.f32 %v1021, 1e-05
        %v1024 = vrsqrt.pop %v1022
        %v1025 = vrsqrt.pop %v1023
        %v1026 = vmul.f32 %v1006, %v1024
        %v1027 = vmul.f32 %v1007, %v1024
        %v1028 = vmul.f32 %v1008, %v1025
        %v1029 = vmul.f32 %v1009, %v1025
        %v1030 = vlaneseq
        %v1031 = vshrl.u32 %v1030, 7
        %v1032 = vsub.s32 1, %v1031
        %v1033 = vrot.slane %v974, %v1032
        %v1034 = vlaneseq
        %v1035 = vshrl.u32 %v1034, 7
        %v1036 = vsub.s32 5, %v1035
        %v1037 = vrot.slane %v974, %v1036
        %v1040 = vlaneseq
        %v1041 = vshrl.u32 %v1040, 7
        %v1042 = vsub.s32 1, %v1041
        %v1043 = vrot.slane %v1033, %v1042
        %v1044 = vlaneseq
        %v1045 = vshrl.u32 %v1044, 7
        %v1046 = vsub.s32 1, %v1045
        %v1047 = vrot.slane %v1037, %v1046
        %v1048 = vmul.f32 %v1026, %v1043
        %v1049 = vmul.f32 %v1027, %v1047
        %v1050 = vmul.f32 %v1028, %v1043
        %v1051 = vmul.f32 %v1029, %v1047
        %v1052 = vlaneseq
        %v1053 = vshrl.u32 %v1052, 7
        %v1054 = vsub.s32 2, %v1053
        %v1055 = vrot.slane %v974, %v1054
        %v1056 = vlaneseq
        %v1057 = vshrl.u32 %v1056, 7
        %v1058 = vsub.s32 6, %v1057
        %v1059 = vrot.slane %v974, %v1058
        %v1062 = vlaneseq
        %v1063 = vshrl.u32 %v1062, 7
        %v1064 = vsub.s32 2, %v1063
        %v1065 = vrot.slane %v1055, %v1064
        %v1066 = vlaneseq
        %v1067 = vshrl.u32 %v1066, 7
        %v1068 = vsub.s32 2, %v1067
        %v1069 = vrot.slane %v1059, %v1068
        %v1070 = vadd.f32 %v1048, %v1065
        %v1071 = vadd.f32 %v1049, %v1069
        %v1072 = vadd.f32 %v1050, %v1065
        %v1073 = vadd.f32 %v1051, %v1069
        %vm1074 = vcmp.gt.f32.partialorder %v1070, 0.0
        %vm1075 = vcmp.gt.f32.partialorder %v1071, 0.0
        %vm1076 = vcmp.gt.f32.partialorder %v1072, 0.0
        %vm1077 = vcmp.gt.f32.partialorder %v1073, 0.0
        %v1078 = vlaneseq
        %v1079 = vshrl.u32 %v1078, 7
        %v1080 = vsub.s32 3, %v1079
        %v1081 = vrot.slane %v974, %v1080
        %v1082 = vlaneseq
        %v1083 = vshrl.u32 %v1082, 7
        %v1084 = vsub.s32 7, %v1083
        %v1085 = vrot.slane %v974, %v1084
        %v1088 = vlaneseq
        %v1089 = vshrl.u32 %v1088, 7
        %v1090 = vsub.s32 3, %v1089
        %v1091 = vrot.slane %v1081, %v1090
        %v1092 = vlaneseq
        %v1093 = vshrl.u32 %v1092, 7
        %v1094 = vsub.s32 3, %v1093
        %v1095 = vrot.slane %v1085, %v1094
        %v1096 = vmul.f32 %v1091, %v1070
        %v1097 = vmul.f32 %v1095, %v1071
        %v1098 = vmul.f32 %v1091, %v1072
        %v1099 = vmul.f32 %v1095, %v1073
        %v1100 = vsel %vm1074, %v1070, %v1096
        %v1101 = vsel %vm1075, %v1071, %v1097
        %v1102 = vsel %vm1076, %v1072, %v1098
        %v1103 = vsel %vm1077, %v1073, %v1099
        %1104 = vst [vmem:[#allocation2 + $0x20] sm:$0xff] %v1100
        %1105 = vst [vmem:[#allocation2 + $0x28] sm:$0xff] %v1101
        %1106 = vst [vmem:[#allocation2 + $0x30] sm:$0xff] %v1102
        %1107 = vst [vmem:[#allocation2 + $0x38] sm:$0xff] %v1103
        %v1108 = vld [vmem:[#allocation2 + $0x10] sm:$0xf0]
        %v1109 = vld [vmem:[#allocation2 + $0x18] sm:$0xf0]
        %v1110 = vld [vmem:[#allocation2 + $0x20] sm:$0xff]
        %v1111 = vld [vmem:[#allocation2 + $0x28] sm:$0xff]
        %v1112 = vld [vmem:[#allocation2 + $0x30] sm:$0xf]
        %v1113 = vld [vmem:[#allocation2 + $0x38] sm:$0xf]
        %s1114 = scalar_lea.vmem [#allocation3], 2048
        %v1115 = vld [vmem:[%s1114] sm:$0xff]
        %v1116 = vld [vmem:[%s1114 + $0x8] sm:$0xff]
        %v1117 = vld [vmem:[%s1114 + $0x10] sm:$0xff]
        %v1118 = vld [vmem:[%s1114 + $0x18] sm:$0xff]
        %v1119 = vld [vmem:[%s1114 + $0x20] sm:$0xff]
        %v1120 = vld [vmem:[%s1114 + $0x28] sm:$0xff]
        %v1121 = vld [vmem:[%s1114 + $0x30] sm:$0xff]
        %v1122 = vld [vmem:[%s1114 + $0x38] sm:$0xff]
        %v1123 = vld [vmem:[%s1114 + $0x40] sm:$0xff]
        %v1124 = vld [vmem:[%s1114 + $0x48] sm:$0xff]
        %v1125 = vld [vmem:[%s1114 + $0x50] sm:$0xff]
        %v1126 = vld [vmem:[%s1114 + $0x58] sm:$0xff]
        %v1127 = vld [vmem:[%s1114 + $0x60] sm:$0xff]
        %v1128 = vld [vmem:[%s1114 + $0x68] sm:$0xff]
        %v1129 = vld [vmem:[%s1114 + $0x70] sm:$0xff]
        %v1130 = vld [vmem:[%s1114 + $0x78] sm:$0xff]
        %v1131 = vld [vmem:[%s1114 + $0x80] sm:$0xff]
        %v1132 = vld [vmem:[%s1114 + $0x88] sm:$0xff]
        %v1133 = vld [vmem:[%s1114 + $0x90] sm:$0xff]
        %v1134 = vld [vmem:[%s1114 + $0x98] sm:$0xff]
        %v1135 = vld [vmem:[%s1114 + $0xa0] sm:$0xff]
        %v1136 = vld [vmem:[%s1114 + $0xa8] sm:$0xff]
        %v1137 = vld [vmem:[%s1114 + $0xb0] sm:$0xff]
        %v1138 = vld [vmem:[%s1114 + $0xb8] sm:$0xff]
        %v1139 = vld [vmem:[%s1114 + $0xc0] sm:$0xff]
        %v1140 = vld [vmem:[%s1114 + $0xc8] sm:$0xff]
        %v1141 = vld [vmem:[%s1114 + $0xd0] sm:$0xff]
        %v1142 = vld [vmem:[%s1114 + $0xd8] sm:$0xff]
        %v1143 = vld [vmem:[%s1114 + $0xe0] sm:$0xff]
        %v1144 = vld [vmem:[%s1114 + $0xe8] sm:$0xff]
        %v1145 = vld [vmem:[%s1114 + $0xf0] sm:$0xff]
        %v1146 = vld [vmem:[%s1114 + $0xf8] sm:$0xff]
        %v1147 = vld [vmem:[%s1114 + $0x100] sm:$0xff]
        %v1148 = vld [vmem:[%s1114 + $0x108] sm:$0xff]
        %v1149 = vld [vmem:[%s1114 + $0x110] sm:$0xff]
        %v1150 = vld [vmem:[%s1114 + $0x118] sm:$0xff]
        %v1151 = vld [vmem:[%s1114 + $0x120] sm:$0xff]
        %v1152 = vld [vmem:[%s1114 + $0x128] sm:$0xff]
        %v1153 = vld [vmem:[%s1114 + $0x130] sm:$0xff]
        %v1154 = vld [vmem:[%s1114 + $0x138] sm:$0xff]
        %v1155 = vld [vmem:[%s1114 + $0x140] sm:$0xff]
        %v1156 = vld [vmem:[%s1114 + $0x148] sm:$0xff]
        %v1157 = vld [vmem:[%s1114 + $0x150] sm:$0xff]
        %v1158 = vld [vmem:[%s1114 + $0x158] sm:$0xff]
        %v1159 = vld [vmem:[%s1114 + $0x160] sm:$0xff]
        %v1160 = vld [vmem:[%s1114 + $0x168] sm:$0xff]
        %v1161 = vld [vmem:[%s1114 + $0x170] sm:$0xff]
        %v1162 = vld [vmem:[%s1114 + $0x178] sm:$0xff]
        %v1163 = vld [vmem:[%s1114 + $0x180] sm:$0xff]
        %v1164 = vld [vmem:[%s1114 + $0x188] sm:$0xff]
        %v1165 = vld [vmem:[%s1114 + $0x190] sm:$0xff]
        %v1166 = vld [vmem:[%s1114 + $0x198] sm:$0xff]
        %v1167 = vld [vmem:[%s1114 + $0x1a0] sm:$0xff]
        %v1168 = vld [vmem:[%s1114 + $0x1a8] sm:$0xff]
        %v1169 = vld [vmem:[%s1114 + $0x1b0] sm:$0xff]
        %v1170 = vld [vmem:[%s1114 + $0x1b8] sm:$0xff]
        %v1171 = vld [vmem:[%s1114 + $0x1c0] sm:$0xff]
        %v1172 = vld [vmem:[%s1114 + $0x1c8] sm:$0xff]
        %v1173 = vld [vmem:[%s1114 + $0x1d0] sm:$0xff]
        %v1174 = vld [vmem:[%s1114 + $0x1d8] sm:$0xff]
        %v1175 = vld [vmem:[%s1114 + $0x1e0] sm:$0xff]
        %v1176 = vld [vmem:[%s1114 + $0x1e8] sm:$0xff]
        %v1177 = vld [vmem:[%s1114 + $0x1f0] sm:$0xff]
        %v1178 = vld [vmem:[%s1114 + $0x1f8] sm:$0xff]
        %v1179 = vld [vmem:[#allocation2 + $0x30] sm:$0xff]
        %v1180 = vld [vmem:[#allocation2 + $0x38] sm:$0xff]
        %s1181 = scalar_lea.vmem [#allocation3], 2560
        %v1182 = vld [vmem:[%s1181] sm:$0xff]
        %v1183 = vld [vmem:[%s1181 + $0x8] sm:$0xff]
        %v1184 = vld [vmem:[%s1181 + $0x10] sm:$0xff]
        %v1185 = vld [vmem:[%s1181 + $0x18] sm:$0xff]
        %v1186 = vld [vmem:[%s1181 + $0x20] sm:$0xff]
        %v1187 = vld [vmem:[%s1181 + $0x28] sm:$0xff]
        %v1188 = vld [vmem:[%s1181 + $0x30] sm:$0xff]
        %v1189 = vld [vmem:[%s1181 + $0x38] sm:$0xff]
        %v1190 = vld [vmem:[%s1181 + $0x40] sm:$0xff]
        %v1191 = vld [vmem:[%s1181 + $0x48] sm:$0xff]
        %v1192 = vld [vmem:[%s1181 + $0x50] sm:$0xff]
        %v1193 = vld [vmem:[%s1181 + $0x58] sm:$0xff]
        %v1194 = vld [vmem:[%s1181 + $0x60] sm:$0xff]
        %v1195 = vld [vmem:[%s1181 + $0x68] sm:$0xff]
        %v1196 = vld [vmem:[%s1181 + $0x70] sm:$0xff]
        %v1197 = vld [vmem:[%s1181 + $0x78] sm:$0xff]
        %v1198 = vld [vmem:[%s1181 + $0x80] sm:$0xff]
        %v1199 = vld [vmem:[%s1181 + $0x88] sm:$0xff]
        %v1200 = vld [vmem:[%s1181 + $0x90] sm:$0xff]
        %v1201 = vld [vmem:[%s1181 + $0x98] sm:$0xff]
        %v1202 = vld [vmem:[%s1181 + $0xa0] sm:$0xff]
        %v1203 = vld [vmem:[%s1181 + $0xa8] sm:$0xff]
        %v1204 = vld [vmem:[%s1181 + $0xb0] sm:$0xff]
        %v1205 = vld [vmem:[%s1181 + $0xb8] sm:$0xff]
        %v1206 = vld [vmem:[%s1181 + $0xc0] sm:$0xff]
        %v1207 = vld [vmem:[%s1181 + $0xc8] sm:$0xff]
        %v1208 = vld [vmem:[%s1181 + $0xd0] sm:$0xff]
        %v1209 = vld [vmem:[%s1181 + $0xd8] sm:$0xff]
        %v1210 = vld [vmem:[%s1181 + $0xe0] sm:$0xff]
        %v1211 = vld [vmem:[%s1181 + $0xe8] sm:$0xff]
        %v1212 = vld [vmem:[%s1181 + $0xf0] sm:$0xff]
        %v1213 = vld [vmem:[%s1181 + $0xf8] sm:$0xff]
        %v1214 = vld [vmem:[%s1181 + $0x100] sm:$0xff]
        %v1215 = vld [vmem:[%s1181 + $0x108] sm:$0xff]
        %v1216 = vld [vmem:[%s1181 + $0x110] sm:$0xff]
        %v1217 = vld [vmem:[%s1181 + $0x118] sm:$0xff]
        %v1218 = vld [vmem:[%s1181 + $0x120] sm:$0xff]
        %v1219 = vld [vmem:[%s1181 + $0x128] sm:$0xff]
        %v1220 = vld [vmem:[%s1181 + $0x130] sm:$0xff]
        %v1221 = vld [vmem:[%s1181 + $0x138] sm:$0xff]
        %v1222 = vld [vmem:[%s1181 + $0x140] sm:$0xff]
        %v1223 = vld [vmem:[%s1181 + $0x148] sm:$0xff]
        %v1224 = vld [vmem:[%s1181 + $0x150] sm:$0xff]
        %v1225 = vld [vmem:[%s1181 + $0x158] sm:$0xff]
        %v1226 = vld [vmem:[%s1181 + $0x160] sm:$0xff]
        %v1227 = vld [vmem:[%s1181 + $0x168] sm:$0xff]
        %v1228 = vld [vmem:[%s1181 + $0x170] sm:$0xff]
        %v1229 = vld [vmem:[%s1181 + $0x178] sm:$0xff]
        %v1230 = vld [vmem:[%s1181 + $0x180] sm:$0xff]
        %v1231 = vld [vmem:[%s1181 + $0x188] sm:$0xff]
        %v1232 = vld [vmem:[%s1181 + $0x190] sm:$0xff]
        %v1233 = vld [vmem:[%s1181 + $0x198] sm:$0xff]
        %v1234 = vld [vmem:[%s1181 + $0x1a0] sm:$0xff]
        %v1235 = vld [vmem:[%s1181 + $0x1a8] sm:$0xff]
        %v1236 = vld [vmem:[%s1181 + $0x1b0] sm:$0xff]
        %v1237 = vld [vmem:[%s1181 + $0x1b8] sm:$0xff]
        %v1238 = vld [vmem:[%s1181 + $0x1c0] sm:$0xff]
        %v1239 = vld [vmem:[%s1181 + $0x1c8] sm:$0xff]
        %v1240 = vld [vmem:[%s1181 + $0x1d0] sm:$0xff]
        %v1241 = vld [vmem:[%s1181 + $0x1d8] sm:$0xff]
        %v1242 = vld [vmem:[%s1181 + $0x1e0] sm:$0xff]
        %v1243 = vld [vmem:[%s1181 + $0x1e8] sm:$0xff]
        %v1244 = vld [vmem:[%s1181 + $0x1f0] sm:$0xff]
        %v1245 = vld [vmem:[%s1181 + $0x1f8] sm:$0xff]
        %1246 = vmatprep.subr.mxu0 %v1183
        %1247 = vmatpush1.msra.mxu0 %v1182
        %1248 = vmatprep.subr.mxu0 %v1185
        %1249 = vmatpush1.msra.mxu0 %v1184
        %1250 = vmatprep.subr.mxu0 %v1187
        %1251 = vmatpush1.msra.mxu0 %v1186
        %1252 = vmatprep.subr.mxu0 %v1189
        %1253 = vmatpush1.msra.mxu0 %v1188
        %1254 = vmatprep.subr.mxu0 %v1191
        %1255 = vmatpush1.msra.mxu0 %v1190
        %1256 = vmatprep.subr.mxu0 %v1193
        %1257 = vmatpush1.msra.mxu0 %v1192
        %1258 = vmatprep.subr.mxu0 %v1195
        %1259 = vmatpush1.msra.mxu0 %v1194
        %1260 = vmatprep.subr.mxu0 %v1197
        %1261 = vmatpush1.msra.mxu0 %v1196
        %1262 = vmatprep.subr.mxu0 %v1199
        %1263 = vmatpush1.msra.mxu0 %v1198
        %1264 = vmatprep.subr.mxu0 %v1201
        %1265 = vmatpush1.msra.mxu0 %v1200
        %1266 = vmatprep.subr.mxu0 %v1203
        %1267 = vmatpush1.msra.mxu0 %v1202
        %1268 = vmatprep.subr.mxu0 %v1205
        %1269 = vmatpush1.msra.mxu0 %v1204
        %1270 = vmatprep.subr.mxu0 %v1207
        %1271 = vmatpush1.msra.mxu0 %v1206
        %1272 = vmatprep.subr.mxu0 %v1209
        %1273 = vmatpush1.msra.mxu0 %v1208
        %1274 = vmatprep.subr.mxu0 %v1211
        %1275 = vmatpush1.msra.mxu0 %v1210
        %1276 = vmatprep.subr.mxu0 %v1213
        %1277 = vmatpush1.msra.mxu0 %v1212
        %1278 = vmatprep.subr.mxu0 %v1215
        %1279 = vmatpush1.msra.mxu0 %v1214
        %1280 = vmatprep.subr.mxu0 %v1217
        %1281 = vmatpush1.msra.mxu0 %v1216
        %1282 = vmatprep.subr.mxu0 %v1219
        %1283 = vmatpush1.msra.mxu0 %v1218
        %1284 = vmatprep.subr.mxu0 %v1221
        %1285 = vmatpush1.msra.mxu0 %v1220
        %1286 = vmatprep.subr.mxu0 %v1223
        %1287 = vmatpush1.msra.mxu0 %v1222
        %1288 = vmatprep.subr.mxu0 %v1225
        %1289 = vmatpush1.msra.mxu0 %v1224
        %1290 = vmatprep.subr.mxu0 %v1227
        %1291 = vmatpush1.msra.mxu0 %v1226
        %1292 = vmatprep.subr.mxu0 %v1229
        %1293 = vmatpush1.msra.mxu0 %v1228
        %1294 = vmatprep.subr.mxu0 %v1231
        %1295 = vmatpush1.msra.mxu0 %v1230
        %1296 = vmatprep.subr.mxu0 %v1233
        %1297 = vmatpush1.msra.mxu0 %v1232
        %1298 = vmatprep.subr.mxu0 %v1235
        %1299 = vmatpush1.msra.mxu0 %v1234
        %1300 = vmatprep.subr.mxu0 %v1237
        %1301 = vmatpush1.msra.mxu0 %v1236
        %1302 = vmatprep.subr.mxu0 %v1239
        %1303 = vmatpush1.msra.mxu0 %v1238
        %1304 = vmatprep.subr.mxu0 %v1241
        %1305 = vmatpush1.msra.mxu0 %v1240
        %1306 = vmatprep.subr.mxu0 %v1243
        %1307 = vmatpush1.msra.mxu0 %v1242
        %1308 = vmatprep.subr.mxu0 %v1245
        %1309 = vmatpush1.msra.mxu0 %v1244
        %1310 = vmatprep.mubr.f32.mxu0 %v1111
        %1311 = vmatmul.mubr.f32.gmra.mrb[0].mxu0 %v1110
        %v1312 = vpop.f32.mrb[0].mxu0
        %v1313 = vadd.f32 0.0, %v1312
        %v1314 = vpop.f32.mrb[0].mxu0
        %v1315 = vadd.f32 0.0, %v1314
        %1316 = vmatprep.mubr.f32.mxu0 %v1180
        %1317 = vmatmul.mubr.f32.gmra.mrb[0].mxu0 %v1179
        %v1318 = vpop.f32.mrb[0].mxu0
        %v1319 = vadd.f32 0.0, %v1318
        %v1320 = vpop.f32.mrb[0].mxu0
        %v1321 = vadd.f32 0.0, %v1320
        %1322 = vdwg.mxu0
        %vm1329 = vcmask 1043456
        %v1330 = vrot.slane %v1108, 4
        %v1331 = vrot.slane %v1110, 4
        %v1332 = vsel %vm1329, %v1330, %v1331
        %v1333 = vrot.slane %v1109, 4
        %v1334 = vrot.slane %v1111, 4
        %v1335 = vsel %vm1329, %v1333, %v1334
        %v1336 = vrot.slane %v1112, 4
        %v1337 = vsel %vm1329, %v1331, %v1336
        %v1338 = vrot.slane %v1113, 4
        %v1339 = vsel %vm1329, %v1334, %v1338
        %1344 = vmatprep.subr.mxu0 %v1116
        %1345 = vmatpush1.msra.mxu0 %v1115
        %1346 = vmatprep.subr.mxu0 %v1118
        %1347 = vmatpush1.msra.mxu0 %v1117
        %1348 = vmatprep.subr.mxu0 %v1120
        %1349 = vmatpush1.msra.mxu0 %v1119
        %1350 = vmatprep.subr.mxu0 %v1122
        %1351 = vmatpush1.msra.mxu0 %v1121
        %1352 = vmatprep.subr.mxu0 %v1124
        %1353 = vmatpush1.msra.mxu0 %v1123
        %1354 = vmatprep.subr.mxu0 %v1126
        %1355 = vmatpush1.msra.mxu0 %v1125
        %1356 = vmatprep.subr.mxu0 %v1128
        %1357 = vmatpush1.msra.mxu0 %v1127
        %1358 = vmatprep.subr.mxu0 %v1130
        %1359 = vmatpush1.msra.mxu0 %v1129
        %1360 = vmatprep.subr.mxu0 %v1132
        %1361 = vmatpush1.msra.mxu0 %v1131
        %1362 = vmatprep.subr.mxu0 %v1134
        %1363 = vmatpush1.msra.mxu0 %v1133
        %1364 = vmatprep.subr.mxu0 %v1136
        %1365 = vmatpush1.msra.mxu0 %v1135
        %1366 = vmatprep.subr.mxu0 %v1138
        %1367 = vmatpush1.msra.mxu0 %v1137
        %1368 = vmatprep.subr.mxu0 %v1140
        %1369 = vmatpush1.msra.mxu0 %v1139
        %1370 = vmatprep.subr.mxu0 %v1142
        %1371 = vmatpush1.msra.mxu0 %v1141
        %1372 = vmatprep.subr.mxu0 %v1144
        %1373 = vmatpush1.msra.mxu0 %v1143
        %1374 = vmatprep.subr.mxu0 %v1146
        %1375 = vmatpush1.msra.mxu0 %v1145
        %1376 = vmatprep.subr.mxu0 %v1148
        %1377 = vmatpush1.msra.mxu0 %v1147
        %1378 = vmatprep.subr.mxu0 %v1150
        %1379 = vmatpush1.msra.mxu0 %v1149
        %1380 = vmatprep.subr.mxu0 %v1152
        %1381 = vmatpush1.msra.mxu0 %v1151
        %1382 = vmatprep.subr.mxu0 %v1154
        %1383 = vmatpush1.msra.mxu0 %v1153
        %1384 = vmatprep.subr.mxu0 %v1156
        %1385 = vmatpush1.msra.mxu0 %v1155
        %1386 = vmatprep.subr.mxu0 %v1158
        %1387 = vmatpush1.msra.mxu0 %v1157
        %1388 = vmatprep.subr.mxu0 %v1160
        %1389 = vmatpush1.msra.mxu0 %v1159
        %1390 = vmatprep.subr.mxu0 %v1162
        %1391 = vmatpush1.msra.mxu0 %v1161
        %1392 = vmatprep.subr.mxu0 %v1164
        %1393 = vmatpush1.msra.mxu0 %v1163
        %1394 = vmatprep.subr.mxu0 %v1166
        %1395 = vmatpush1.msra.mxu0 %v1165
        %1396 = vmatprep.subr.mxu0 %v1168
        %1397 = vmatpush1.msra.mxu0 %v1167
        %1398 = vmatprep.subr.mxu0 %v1170
        %1399 = vmatpush1.msra.mxu0 %v1169
        %1400 = vmatprep.subr.mxu0 %v1172
        %1401 = vmatpush1.msra.mxu0 %v1171
        %1402 = vmatprep.subr.mxu0 %v1174
        %1403 = vmatpush1.msra.mxu0 %v1173
        %1404 = vmatprep.subr.mxu0 %v1176
        %1405 = vmatpush1.msra.mxu0 %v1175
        %1406 = vmatprep.subr.mxu0 %v1178
        %1407 = vmatpush1.msra.mxu0 %v1177
        %1408 = vmatprep.mubr.f32.mxu0 %v1335
        %1409 = vmatmul.mubr.f32.gmra.mrb[0].mxu0 %v1332
        %v1410 = vpop.f32.mrb[0].mxu0
        %v1411 = vadd.f32 %v1313, %v1410
        %v1412 = vpop.f32.mrb[0].mxu0
        %v1413 = vadd.f32 %v1315, %v1412
        %1414 = vmatprep.mubr.f32.mxu0 %v1339
        %1415 = vmatmul.mubr.f32.gmra.mrb[0].mxu0 %v1337
        %v1416 = vpop.f32.mrb[0].mxu0
        %v1417 = vadd.f32 %v1319, %v1416
        %v1418 = vpop.f32.mrb[0].mxu0
        %v1419 = vadd.f32 %v1321, %v1418
        %1420 = vdwg.mxu0
        %s1421 = scalar_lea.vmem [#allocation5], 16
        %v1422 = vld [vmem:[%s1421] sm:$0xff]
        %v1424 = vlaneseq
        %v1425 = vshrl.u32 %v1424, 7
        %v1426 = vsub.s32 0, %v1425
        %v1427 = vrot.slane %v1422, %v1426
        %v1428 = vlaneseq
        %v1429 = vshrl.u32 %v1428, 7
        %v1430 = vsub.s32 4, %v1429
        %v1431 = vrot.slane %v1422, %v1430
        %v1434 = vlaneseq
        %v1435 = vshrl.u32 %v1434, 7
        %v1436 = vsub.s32 0, %v1435
        %v1437 = vrot.slane %v1427, %v1436
        %v1438 = vlaneseq
        %v1439 = vshrl.u32 %v1438, 7
        %v1440 = vsub.s32 0, %v1439
        %v1441 = vrot.slane %v1431, %v1440
        %v1442 = vadd.f32 %v1411, %v1437
        %v1443 = vadd.f32 %v1413, %v1441
        %v1444 = vadd.f32 %v1417, %v1437
        %v1445 = vadd.f32 %v1419, %v1441
        %v1446 = vadd.f32 %v1442, %v1443
        %1447 = vadd.xlane.f32.xlu0 %v1446
        %v1448 = vpop.xlane.xlu0 %1447
        %v1449 = vadd.f32 %v1444, %v1445
        %1450 = vadd.xlane.f32.xlu0 %v1449
        %v1451 = vpop.xlane.xlu0 %1450
        %v1452 = vmul.f32 %v1448, %v555
        %v1453 = vmul.f32 %v1451, %v555
        %v1454 = vsub.f32 %v1442, %v1452
        %v1455 = vsub.f32 %v1443, %v1452
        %v1456 = vsub.f32 %v1444, %v1453
        %v1457 = vsub.f32 %v1445, %v1453
        %v1458 = vmul.f32 %v1454, %v1454
        %v1459 = vmul.f32 %v1455, %v1455
        %v1460 = vmul.f32 %v1456, %v1456
        %v1461 = vmul.f32 %v1457, %v1457
        %v1462 = vadd.f32 %v1458, %v1459
        %1463 = vadd.xlane.f32.xlu0 %v1462
        %v1464 = vpop.xlane.xlu0 %1463
        %v1465 = vadd.f32 %v1460, %v1461
        %1466 = vadd.xlane.f32.xlu0 %v1465
        %v1467 = vpop.xlane.xlu0 %1466
        %v1468 = vmul.f32 %v1464, %v555
        %v1469 = vmul.f32 %v1467, %v555
        %v1470 = vadd.f32 %v1468, 1e-05
        %v1471 = vadd.f32 %v1469, 1e-05
        %v1472 = vrsqrt.pop %v1470
        %v1473 = vrsqrt.pop %v1471
        %v1474 = vmul.f32 %v1454, %v1472
        %v1475 = vmul.f32 %v1455, %v1472
        %v1476 = vmul.f32 %v1456, %v1473
        %v1477 = vmul.f32 %v1457, %v1473
        %v1478 = vlaneseq
        %v1479 = vshrl.u32 %v1478, 7
        %v1480 = vsub.s32 1, %v1479
        %v1481 = vrot.slane %v1422, %v1480
        %v1482 = vlaneseq
        %v1483 = vshrl.u32 %v1482, 7
        %v1484 = vsub.s32 5, %v1483
        %v1485 = vrot.slane %v1422, %v1484
        %v1488 = vlaneseq
        %v1489 = vshrl.u32 %v1488, 7
        %v1490 = vsub.s32 1, %v1489
        %v1491 = vrot.slane %v1481, %v1490
        %v1492 = vlaneseq
        %v1493 = vshrl.u32 %v1492, 7
        %v1494 = vsub.s32 1, %v1493
        %v1495 = vrot.slane %v1485, %v1494
        %v1496 = vmul.f32 %v1474, %v1491
        %v1497 = vmul.f32 %v1475, %v1495
        %v1498 = vmul.f32 %v1476, %v1491
        %v1499 = vmul.f32 %v1477, %v1495
        %v1500 = vlaneseq
        %v1501 = vshrl.u32 %v1500, 7
        %v1502 = vsub.s32 2, %v1501
        %v1503 = vrot.slane %v1422, %v1502
        %v1504 = vlaneseq
        %v1505 = vshrl.u32 %v1504, 7
        %v1506 = vsub.s32 6, %v1505
        %v1507 = vrot.slane %v1422, %v1506
        %v1510 = vlaneseq
        %v1511 = vshrl.u32 %v1510, 7
        %v1512 = vsub.s32 2, %v1511
        %v1513 = vrot.slane %v1503, %v1512
        %v1514 = vlaneseq
        %v1515 = vshrl.u32 %v1514, 7
        %v1516 = vsub.s32 2, %v1515
        %v1517 = vrot.slane %v1507, %v1516
        %v1518 = vadd.f32 %v1496, %v1513
        %v1519 = vadd.f32 %v1497, %v1517
        %v1520 = vadd.f32 %v1498, %v1513
        %v1521 = vadd.f32 %v1499, %v1517
        %vm1522 = vcmp.gt.f32.partialorder %v1518, 0.0
        %vm1523 = vcmp.gt.f32.partialorder %v1519, 0.0
        %vm1524 = vcmp.gt.f32.partialorder %v1520, 0.0
        %vm1525 = vcmp.gt.f32.partialorder %v1521, 0.0
        %v1526 = vlaneseq
        %v1527 = vshrl.u32 %v1526, 7
        %v1528 = vsub.s32 3, %v1527
        %v1529 = vrot.slane %v1422, %v1528
        %v1530 = vlaneseq
        %v1531 = vshrl.u32 %v1530, 7
        %v1532 = vsub.s32 7, %v1531
        %v1533 = vrot.slane %v1422, %v1532
        %v1536 = vlaneseq
        %v1537 = vshrl.u32 %v1536, 7
        %v1538 = vsub.s32 3, %v1537
        %v1539 = vrot.slane %v1529, %v1538
        %v1540 = vlaneseq
        %v1541 = vshrl.u32 %v1540, 7
        %v1542 = vsub.s32 3, %v1541
        %v1543 = vrot.slane %v1533, %v1542
        %v1544 = vmul.f32 %v1539, %v1518
        %v1545 = vmul.f32 %v1543, %v1519
        %v1546 = vmul.f32 %v1539, %v1520
        %v1547 = vmul.f32 %v1543, %v1521
        %v1548 = vsel %vm1522, %v1518, %v1544
        %v1549 = vsel %vm1523, %v1519, %v1545
        %v1550 = vsel %vm1524, %v1520, %v1546
        %v1551 = vsel %vm1525, %v1521, %v1547
        %1552 = vst [vmem:[#allocation2 + $0x20] sm:$0xff] %v1548
        %1553 = vst [vmem:[#allocation2 + $0x28] sm:$0xff] %v1549
        %1554 = vst [vmem:[#allocation2 + $0x30] sm:$0xff] %v1550
        %1555 = vst [vmem:[#allocation2 + $0x38] sm:$0xff] %v1551
        %v1556 = vld [vmem:[#allocation2 + $0x10] sm:$0xff]
        %v1557 = vld [vmem:[#allocation2 + $0x18] sm:$0xff]
        %v1558 = vld [vmem:[#allocation2 + $0x20] sm:$0xff]
        %v1559 = vld [vmem:[#allocation2 + $0x28] sm:$0xff]
        %s1560 = scalar_lea.vmem [#allocation3], 3072
        %v1561 = vld [vmem:[%s1560] sm:$0xff]
        %v1562 = vld [vmem:[%s1560 + $0x8] sm:$0xff]
        %v1563 = vld [vmem:[%s1560 + $0x10] sm:$0xff]
        %v1564 = vld [vmem:[%s1560 + $0x18] sm:$0xff]
        %v1565 = vld [vmem:[%s1560 + $0x20] sm:$0xff]
        %v1566 = vld [vmem:[%s1560 + $0x28] sm:$0xff]
        %v1567 = vld [vmem:[%s1560 + $0x30] sm:$0xff]
        %v1568 = vld [vmem:[%s1560 + $0x38] sm:$0xff]
        %v1569 = vld [vmem:[%s1560 + $0x40] sm:$0xff]
        %v1570 = vld [vmem:[%s1560 + $0x48] sm:$0xff]
        %v1571 = vld [vmem:[%s1560 + $0x50] sm:$0xff]
        %v1572 = vld [vmem:[%s1560 + $0x58] sm:$0xff]
        %v1573 = vld [vmem:[%s1560 + $0x60] sm:$0xff]
        %v1574 = vld [vmem:[%s1560 + $0x68] sm:$0xff]
        %v1575 = vld [vmem:[%s1560 + $0x70] sm:$0xff]
        %v1576 = vld [vmem:[%s1560 + $0x78] sm:$0xff]
        %v1577 = vld [vmem:[%s1560 + $0x80] sm:$0xff]
        %v1578 = vld [vmem:[%s1560 + $0x88] sm:$0xff]
        %v1579 = vld [vmem:[%s1560 + $0x90] sm:$0xff]
        %v1580 = vld [vmem:[%s1560 + $0x98] sm:$0xff]
        %v1581 = vld [vmem:[%s1560 + $0xa0] sm:$0xff]
        %v1582 = vld [vmem:[%s1560 + $0xa8] sm:$0xff]
        %v1583 = vld [vmem:[%s1560 + $0xb0] sm:$0xff]
        %v1584 = vld [vmem:[%s1560 + $0xb8] sm:$0xff]
        %v1585 = vld [vmem:[%s1560 + $0xc0] sm:$0xff]
        %v1586 = vld [vmem:[%s1560 + $0xc8] sm:$0xff]
        %v1587 = vld [vmem:[%s1560 + $0xd0] sm:$0xff]
        %v1588 = vld [vmem:[%s1560 + $0xd8] sm:$0xff]
        %v1589 = vld [vmem:[%s1560 + $0xe0] sm:$0xff]
        %v1590 = vld [vmem:[%s1560 + $0xe8] sm:$0xff]
        %v1591 = vld [vmem:[%s1560 + $0xf0] sm:$0xff]
        %v1592 = vld [vmem:[%s1560 + $0xf8] sm:$0xff]
        %v1593 = vld [vmem:[%s1560 + $0x100] sm:$0xff]
        %v1594 = vld [vmem:[%s1560 + $0x108] sm:$0xff]
        %v1595 = vld [vmem:[%s1560 + $0x110] sm:$0xff]
        %v1596 = vld [vmem:[%s1560 + $0x118] sm:$0xff]
        %v1597 = vld [vmem:[%s1560 + $0x120] sm:$0xff]
        %v1598 = vld [vmem:[%s1560 + $0x128] sm:$0xff]
        %v1599 = vld [vmem:[%s1560 + $0x130] sm:$0xff]
        %v1600 = vld [vmem:[%s1560 + $0x138] sm:$0xff]
        %v1601 = vld [vmem:[%s1560 + $0x140] sm:$0xff]
        %v1602 = vld [vmem:[%s1560 + $0x148] sm:$0xff]
        %v1603 = vld [vmem:[%s1560 + $0x150] sm:$0xff]
        %v1604 = vld [vmem:[%s1560 + $0x158] sm:$0xff]
        %v1605 = vld [vmem:[%s1560 + $0x160] sm:$0xff]
        %v1606 = vld [vmem:[%s1560 + $0x168] sm:$0xff]
        %v1607 = vld [vmem:[%s1560 + $0x170] sm:$0xff]
        %v1608 = vld [vmem:[%s1560 + $0x178] sm:$0xff]
        %v1609 = vld [vmem:[%s1560 + $0x180] sm:$0xff]
        %v1610 = vld [vmem:[%s1560 + $0x188] sm:$0xff]
        %v1611 = vld [vmem:[%s1560 + $0x190] sm:$0xff]
        %v1612 = vld [vmem:[%s1560 + $0x198] sm:$0xff]
        %v1613 = vld [vmem:[%s1560 + $0x1a0] sm:$0xff]
        %v1614 = vld [vmem:[%s1560 + $0x1a8] sm:$0xff]
        %v1615 = vld [vmem:[%s1560 + $0x1b0] sm:$0xff]
        %v1616 = vld [vmem:[%s1560 + $0x1b8] sm:$0xff]
        %v1617 = vld [vmem:[%s1560 + $0x1c0] sm:$0xff]
        %v1618 = vld [vmem:[%s1560 + $0x1c8] sm:$0xff]
        %v1619 = vld [vmem:[%s1560 + $0x1d0] sm:$0xff]
        %v1620 = vld [vmem:[%s1560 + $0x1d8] sm:$0xff]
        %v1621 = vld [vmem:[%s1560 + $0x1e0] sm:$0xff]
        %v1622 = vld [vmem:[%s1560 + $0x1e8] sm:$0xff]
        %v1623 = vld [vmem:[%s1560 + $0x1f0] sm:$0xff]
        %v1624 = vld [vmem:[%s1560 + $0x1f8] sm:$0xff]
        %v1625 = vld [vmem:[#allocation2 + $0x20] sm:$0xff]
        %v1626 = vld [vmem:[#allocation2 + $0x28] sm:$0xff]
        %v1627 = vld [vmem:[#allocation2 + $0x30] sm:$0xff]
        %v1628 = vld [vmem:[#allocation2 + $0x38] sm:$0xff]
        %s1629 = scalar_lea.vmem [#allocation3], 3584
        %v1630 = vld [vmem:[%s1629] sm:$0xff]
        %v1631 = vld [vmem:[%s1629 + $0x8] sm:$0xff]
        %v1632 = vld [vmem:[%s1629 + $0x10] sm:$0xff]
        %v1633 = vld [vmem:[%s1629 + $0x18] sm:$0xff]
        %v1634 = vld [vmem:[%s1629 + $0x20] sm:$0xff]
        %v1635 = vld [vmem:[%s1629 + $0x28] sm:$0xff]
        %v1636 = vld [vmem:[%s1629 + $0x30] sm:$0xff]
        %v1637 = vld [vmem:[%s1629 + $0x38] sm:$0xff]
        %v1638 = vld [vmem:[%s1629 + $0x40] sm:$0xff]
        %v1639 = vld [vmem:[%s1629 + $0x48] sm:$0xff]
        %v1640 = vld [vmem:[%s1629 + $0x50] sm:$0xff]
        %v1641 = vld [vmem:[%s1629 + $0x58] sm:$0xff]
        %v1642 = vld [vmem:[%s1629 + $0x60] sm:$0xff]
        %v1643 = vld [vmem:[%s1629 + $0x68] sm:$0xff]
        %v1644 = vld [vmem:[%s1629 + $0x70] sm:$0xff]
        %v1645 = vld [vmem:[%s1629 + $0x78] sm:$0xff]
        %v1646 = vld [vmem:[%s1629 + $0x80] sm:$0xff]
        %v1647 = vld [vmem:[%s1629 + $0x88] sm:$0xff]
        %v1648 = vld [vmem:[%s1629 + $0x90] sm:$0xff]
        %v1649 = vld [vmem:[%s1629 + $0x98] sm:$0xff]
        %v1650 = vld [vmem:[%s1629 + $0xa0] sm:$0xff]
        %v1651 = vld [vmem:[%s1629 + $0xa8] sm:$0xff]
        %v1652 = vld [vmem:[%s1629 + $0xb0] sm:$0xff]
        %v1653 = vld [vmem:[%s1629 + $0xb8] sm:$0xff]
        %v1654 = vld [vmem:[%s1629 + $0xc0] sm:$0xff]
        %v1655 = vld [vmem:[%s1629 + $0xc8] sm:$0xff]
        %v1656 = vld [vmem:[%s1629 + $0xd0] sm:$0xff]
        %v1657 = vld [vmem:[%s1629 + $0xd8] sm:$0xff]
        %v1658 = vld [vmem:[%s1629 + $0xe0] sm:$0xff]
        %v1659 = vld [vmem:[%s1629 + $0xe8] sm:$0xff]
        %v1660 = vld [vmem:[%s1629 + $0xf0] sm:$0xff]
        %v1661 = vld [vmem:[%s1629 + $0xf8] sm:$0xff]
        %v1662 = vld [vmem:[%s1629 + $0x100] sm:$0xff]
        %v1663 = vld [vmem:[%s1629 + $0x108] sm:$0xff]
        %v1664 = vld [vmem:[%s1629 + $0x110] sm:$0xff]
        %v1665 = vld [vmem:[%s1629 + $0x118] sm:$0xff]
        %v1666 = vld [vmem:[%s1629 + $0x120] sm:$0xff]
        %v1667 = vld [vmem:[%s1629 + $0x128] sm:$0xff]
        %v1668 = vld [vmem:[%s1629 + $0x130] sm:$0xff]
        %v1669 = vld [vmem:[%s1629 + $0x138] sm:$0xff]
        %v1670 = vld [vmem:[%s1629 + $0x140] sm:$0xff]
        %v1671 = vld [vmem:[%s1629 + $0x148] sm:$0xff]
        %v1672 = vld [vmem:[%s1629 + $0x150] sm:$0xff]
        %v1673 = vld [vmem:[%s1629 + $0x158] sm:$0xff]
        %v1674 = vld [vmem:[%s1629 + $0x160] sm:$0xff]
        %v1675 = vld [vmem:[%s1629 + $0x168] sm:$0xff]
        %v1676 = vld [vmem:[%s1629 + $0x170] sm:$0xff]
        %v1677 = vld [vmem:[%s1629 + $0x178] sm:$0xff]
        %v1678 = vld [vmem:[%s1629 + $0x180] sm:$0xff]
        %v1679 = vld [vmem:[%s1629 + $0x188] sm:$0xff]
        %v1680 = vld [vmem:[%s1629 + $0x190] sm:$0xff]
        %v1681 = vld [vmem:[%s1629 + $0x198] sm:$0xff]
        %v1682 = vld [vmem:[%s1629 + $0x1a0] sm:$0xff]
        %v1683 = vld [vmem:[%s1629 + $0x1a8] sm:$0xff]
        %v1684 = vld [vmem:[%s1629 + $0x1b0] sm:$0xff]
        %v1685 = vld [vmem:[%s1629 + $0x1b8] sm:$0xff]
        %v1686 = vld [vmem:[%s1629 + $0x1c0] sm:$0xff]
        %v1687 = vld [vmem:[%s1629 + $0x1c8] sm:$0xff]
        %v1688 = vld [vmem:[%s1629 + $0x1d0] sm:$0xff]
        %v1689 = vld [vmem:[%s1629 + $0x1d8] sm:$0xff]
        %v1690 = vld [vmem:[%s1629 + $0x1e0] sm:$0xff]
        %v1691 = vld [vmem:[%s1629 + $0x1e8] sm:$0xff]
        %v1692 = vld [vmem:[%s1629 + $0x1f0] sm:$0xff]
        %v1693 = vld [vmem:[%s1629 + $0x1f8] sm:$0xff]
        %1694 = vmatprep.subr.mxu0 %v1631
        %1695 = vmatpush1.msra.mxu0 %v1630
        %1696 = vmatprep.subr.mxu0 %v1633
        %1697 = vmatpush1.msra.mxu0 %v1632
        %1698 = vmatprep.subr.mxu0 %v1635
        %1699 = vmatpush1.msra.mxu0 %v1634
        %1700 = vmatprep.subr.mxu0 %v1637
        %1701 = vmatpush1.msra.mxu0 %v1636
        %1702 = vmatprep.subr.mxu0 %v1639
        %1703 = vmatpush1.msra.mxu0 %v1638
        %1704 = vmatprep.subr.mxu0 %v1641
        %1705 = vmatpush1.msra.mxu0 %v1640
        %1706 = vmatprep.subr.mxu0 %v1643
        %1707 = vmatpush1.msra.mxu0 %v1642
        %1708 = vmatprep.subr.mxu0 %v1645
        %1709 = vmatpush1.msra.mxu0 %v1644
        %1710 = vmatprep.subr.mxu0 %v1647
        %1711 = vmatpush1.msra.mxu0 %v1646
        %1712 = vmatprep.subr.mxu0 %v1649
        %1713 = vmatpush1.msra.mxu0 %v1648
        %1714 = vmatprep.subr.mxu0 %v1651
        %1715 = vmatpush1.msra.mxu0 %v1650
        %1716 = vmatprep.subr.mxu0 %v1653
        %1717 = vmatpush1.msra.mxu0 %v1652
        %1718 = vmatprep.subr.mxu0 %v1655
        %1719 = vmatpush1.msra.mxu0 %v1654
        %1720 = vmatprep.subr.mxu0 %v1657
        %1721 = vmatpush1.msra.mxu0 %v1656
        %1722 = vmatprep.subr.mxu0 %v1659
        %1723 = vmatpush1.msra.mxu0 %v1658
        %1724 = vmatprep.subr.mxu0 %v1661
        %1725 = vmatpush1.msra.mxu0 %v1660
        %1726 = vmatprep.subr.mxu0 %v1663
        %1727 = vmatpush1.msra.mxu0 %v1662
        %1728 = vmatprep.subr.mxu0 %v1665
        %1729 = vmatpush1.msra.mxu0 %v1664
        %1730 = vmatprep.subr.mxu0 %v1667
        %1731 = vmatpush1.msra.mxu0 %v1666
        %1732 = vmatprep.subr.mxu0 %v1669
        %1733 = vmatpush1.msra.mxu0 %v1668
        %1734 = vmatprep.subr.mxu0 %v1671
        %1735 = vmatpush1.msra.mxu0 %v1670
        %1736 = vmatprep.subr.mxu0 %v1673
        %1737 = vmatpush1.msra.mxu0 %v1672
        %1738 = vmatprep.subr.mxu0 %v1675
        %1739 = vmatpush1.msra.mxu0 %v1674
        %1740 = vmatprep.subr.mxu0 %v1677
        %1741 = vmatpush1.msra.mxu0 %v1676
        %1742 = vmatprep.subr.mxu0 %v1679
        %1743 = vmatpush1.msra.mxu0 %v1678
        %1744 = vmatprep.subr.mxu0 %v1681
        %1745 = vmatpush1.msra.mxu0 %v1680
        %1746 = vmatprep.subr.mxu0 %v1683
        %1747 = vmatpush1.msra.mxu0 %v1682
        %1748 = vmatprep.subr.mxu0 %v1685
        %1749 = vmatpush1.msra.mxu0 %v1684
        %1750 = vmatprep.subr.mxu0 %v1687
        %1751 = vmatpush1.msra.mxu0 %v1686
        %1752 = vmatprep.subr.mxu0 %v1689
        %1753 = vmatpush1.msra.mxu0 %v1688
        %1754 = vmatprep.subr.mxu0 %v1691
        %1755 = vmatpush1.msra.mxu0 %v1690
        %1756 = vmatprep.subr.mxu0 %v1693
        %1757 = vmatpush1.msra.mxu0 %v1692
        %1758 = vmatprep.mubr.f32.mxu0 %v1626
        %1759 = vmatmul.mubr.f32.gmra.mrb[0].mxu0 %v1625
        %v1760 = vpop.f32.mrb[0].mxu0
        %v1761 = vadd.f32 0.0, %v1760
        %v1762 = vpop.f32.mrb[0].mxu0
        %v1763 = vadd.f32 0.0, %v1762
        %1764 = vmatprep.mubr.f32.mxu0 %v1628
        %1765 = vmatmul.mubr.f32.gmra.mrb[0].mxu0 %v1627
        %v1766 = vpop.f32.mrb[0].mxu0
        %v1767 = vadd.f32 0.0, %v1766
        %v1768 = vpop.f32.mrb[0].mxu0
        %v1769 = vadd.f32 0.0, %v1768
        %1770 = vdwg.mxu0
        %1771 = vmatprep.subr.mxu0 %v1562
        %1772 = vmatpush1.msra.mxu0 %v1561
        %1773 = vmatprep.subr.mxu0 %v1564
        %1774 = vmatpush1.msra.mxu0 %v1563
        %1775 = vmatprep.subr.mxu0 %v1566
        %1776 = vmatpush1.msra.mxu0 %v1565
        %1777 = vmatprep.subr.mxu0 %v1568
        %1778 = vmatpush1.msra.mxu0 %v1567
        %1779 = vmatprep.subr.mxu0 %v1570
        %1780 = vmatpush1.msra.mxu0 %v1569
        %1781 = vmatprep.subr.mxu0 %v1572
        %1782 = vmatpush1.msra.mxu0 %v1571
        %1783 = vmatprep.subr.mxu0 %v1574
        %1784 = vmatpush1.msra.mxu0 %v1573
        %1785 = vmatprep.subr.mxu0 %v1576
        %1786 = vmatpush1.msra.mxu0 %v1575
        %1787 = vmatprep.subr.mxu0 %v1578
        %1788 = vmatpush1.msra.mxu0 %v1577
        %1789 = vmatprep.subr.mxu0 %v1580
        %1790 = vmatpush1.msra.mxu0 %v1579
        %1791 = vmatprep.subr.mxu0 %v1582
        %1792 = vmatpush1.msra.mxu0 %v1581
        %1793 = vmatprep.subr.mxu0 %v1584
        %1794 = vmatpush1.msra.mxu0 %v1583
        %1795 = vmatprep.subr.mxu0 %v1586
        %1796 = vmatpush1.msra.mxu0 %v1585
        %1797 = vmatprep.subr.mxu0 %v1588
        %1798 = vmatpush1.msra.mxu0 %v1587
        %1799 = vmatprep.subr.mxu0 %v1590
        %1800 = vmatpush1.msra.mxu0 %v1589
        %1801 = vmatprep.subr.mxu0 %v1592
        %1802 = vmatpush1.msra.mxu0 %v1591
        %1803 = vmatprep.subr.mxu0 %v1594
        %1804 = vmatpush1.msra.mxu0 %v1593
        %1805 = vmatprep.subr.mxu0 %v1596
        %1806 = vmatpush1.msra.mxu0 %v1595
        %1807 = vmatprep.subr.mxu0 %v1598
        %1808 = vmatpush1.msra.mxu0 %v1597
        %1809 = vmatprep.subr.mxu0 %v1600
        %1810 = vmatpush1.msra.mxu0 %v1599
        %1811 = vmatprep.subr.mxu0 %v1602
        %1812 = vmatpush1.msra.mxu0 %v1601
        %1813 = vmatprep.subr.mxu0 %v1604
        %1814 = vmatpush1.msra.mxu0 %v1603
        %1815 = vmatprep.subr.mxu0 %v1606
        %1816 = vmatpush1.msra.mxu0 %v1605
        %1817 = vmatprep.subr.mxu0 %v1608
        %1818 = vmatpush1.msra.mxu0 %v1607
        %1819 = vmatprep.subr.mxu0 %v1610
        %1820 = vmatpush1.msra.mxu0 %v1609
        %1821 = vmatprep.subr.mxu0 %v1612
        %1822 = vmatpush1.msra.mxu0 %v1611
        %1823 = vmatprep.subr.mxu0 %v1614
        %1824 = vmatpush1.msra.mxu0 %v1613
        %1825 = vmatprep.subr.mxu0 %v1616
        %1826 = vmatpush1.msra.mxu0 %v1615
        %1827 = vmatprep.subr.mxu0 %v1618
        %1828 = vmatpush1.msra.mxu0 %v1617
        %1829 = vmatprep.subr.mxu0 %v1620
        %1830 = vmatpush1.msra.mxu0 %v1619
        %1831 = vmatprep.subr.mxu0 %v1622
        %1832 = vmatpush1.msra.mxu0 %v1621
        %1833 = vmatprep.subr.mxu0 %v1624
        %1834 = vmatpush1.msra.mxu0 %v1623
        %1835 = vmatprep.mubr.f32.mxu0 %v1557
        %1836 = vmatmul.mubr.f32.gmra.mrb[0].mxu0 %v1556
        %v1837 = vpop.f32.mrb[0].mxu0
        %v1838 = vadd.f32 %v1761, %v1837
        %v1839 = vpop.f32.mrb[0].mxu0
        %v1840 = vadd.f32 %v1763, %v1839
        %1841 = vmatprep.mubr.f32.mxu0 %v1559
        %1842 = vmatmul.mubr.f32.gmra.mrb[0].mxu0 %v1558
        %v1843 = vpop.f32.mrb[0].mxu0
        %v1844 = vadd.f32 %v1767, %v1843
        %v1845 = vpop.f32.mrb[0].mxu0
        %v1846 = vadd.f32 %v1769, %v1845
        %1847 = vdwg.mxu0
        %s1848 = scalar_lea.vmem [#allocation5], 24
        %v1849 = vld [vmem:[%s1848] sm:$0xff]
        %v1851 = vlaneseq
        %v1852 = vshrl.u32 %v1851, 7
        %v1853 = vsub.s32 0, %v1852
        %v1854 = vrot.slane %v1849, %v1853
        %v1855 = vlaneseq
        %v1856 = vshrl.u32 %v1855, 7
        %v1857 = vsub.s32 4, %v1856
        %v1858 = vrot.slane %v1849, %v1857
        %v1861 = vlaneseq
        %v1862 = vshrl.u32 %v1861, 7
        %v1863 = vsub.s32 0, %v1862
        %v1864 = vrot.slane %v1854, %v1863
        %v1865 = vlaneseq
        %v1866 = vshrl.u32 %v1865, 7
        %v1867 = vsub.s32 0, %v1866
        %v1868 = vrot.slane %v1858, %v1867
        %v1869 = vadd.f32 %v1838, %v1864
        %v1870 = vadd.f32 %v1840, %v1868
        %v1871 = vadd.f32 %v1844, %v1864
        %v1872 = vadd.f32 %v1846, %v1868
        %v1873 = vadd.f32 %v1869, %v1870
        %1874 = vadd.xlane.f32.xlu0 %v1873
        %v1875 = vpop.xlane.xlu0 %1874
        %v1876 = vadd.f32 %v1871, %v1872
        %1877 = vadd.xlane.f32.xlu0 %v1876
        %v1878 = vpop.xlane.xlu0 %1877
        %v1879 = vmul.f32 %v1875, %v555
        %v1880 = vmul.f32 %v1878, %v555
        %v1881 = vsub.f32 %v1869, %v1879
        %v1882 = vsub.f32 %v1870, %v1879
        %v1883 = vsub.f32 %v1871, %v1880
        %v1884 = vsub.f32 %v1872, %v1880
        %v1885 = vmul.f32 %v1881, %v1881
        %v1886 = vmul.f32 %v1882, %v1882
        %v1887 = vmul.f32 %v1883, %v1883
        %v1888 = vmul.f32 %v1884, %v1884
        %v1889 = vadd.f32 %v1885, %v1886
        %1890 = vadd.xlane.f32.xlu0 %v1889
        %v1891 = vpop.xlane.xlu0 %1890
        %v1892 = vadd.f32 %v1887, %v1888
        %1893 = vadd.xlane.f32.xlu0 %v1892
        %v1894 = vpop.xlane.xlu0 %1893
        %v1895 = vmul.f32 %v1891, %v555
        %v1896 = vmul.f32 %v1894, %v555
        %v1897 = vadd.f32 %v1895, 1e-05
        %v1898 = vadd.f32 %v1896, 1e-05
        %v1899 = vrsqrt.pop %v1897
        %v1900 = vrsqrt.pop %v1898
        %v1901 = vmul.f32 %v1881, %v1899
        %v1902 = vmul.f32 %v1882, %v1899
        %v1903 = vmul.f32 %v1883, %v1900
        %v1904 = vmul.f32 %v1884, %v1900
        %v1905 = vlaneseq
        %v1906 = vshrl.u32 %v1905, 7
        %v1907 = vsub.s32 1, %v1906
        %v1908 = vrot.slane %v1849, %v1907
        %v1909 = vlaneseq
        %v1910 = vshrl.u32 %v1909, 7
        %v1911 = vsub.s32 5, %v1910
        %v1912 = vrot.slane %v1849, %v1911
        %v1915 = vlaneseq
        %v1916 = vshrl.u32 %v1915, 7
        %v1917 = vsub.s32 1, %v1916
        %v1918 = vrot.slane %v1908, %v1917
        %v1919 = vlaneseq
        %v1920 = vshrl.u32 %v1919, 7
        %v1921 = vsub.s32 1, %v1920
        %v1922 = vrot.slane %v1912, %v1921
        %v1923 = vmul.f32 %v1901, %v1918
        %v1924 = vmul.f32 %v1902, %v1922
        %v1925 = vmul.f32 %v1903, %v1918
        %v1926 = vmul.f32 %v1904, %v1922
        %v1927 = vlaneseq
        %v1928 = vshrl.u32 %v1927, 7
        %v1929 = vsub.s32 2, %v1928
        %v1930 = vrot.slane %v1849, %v1929
        %v1931 = vlaneseq
        %v1932 = vshrl.u32 %v1931, 7
        %v1933 = vsub.s32 6, %v1932
        %v1934 = vrot.slane %v1849, %v1933
        %v1937 = vlaneseq
        %v1938 = vshrl.u32 %v1937, 7
        %v1939 = vsub.s32 2, %v1938
        %v1940 = vrot.slane %v1930, %v1939
        %v1941 = vlaneseq
        %v1942 = vshrl.u32 %v1941, 7
        %v1943 = vsub.s32 2, %v1942
        %v1944 = vrot.slane %v1934, %v1943
        %v1945 = vadd.f32 %v1923, %v1940
        %v1946 = vadd.f32 %v1924, %v1944
        %v1947 = vadd.f32 %v1925, %v1940
        %v1948 = vadd.f32 %v1926, %v1944
        %vm1949 = vcmp.gt.f32.partialorder %v1945, 0.0
        %vm1950 = vcmp.gt.f32.partialorder %v1946, 0.0
        %vm1951 = vcmp.gt.f32.partialorder %v1947, 0.0
        %vm1952 = vcmp.gt.f32.partialorder %v1948, 0.0
        %v1953 = vlaneseq
        %v1954 = vshrl.u32 %v1953, 7
        %v1955 = vsub.s32 3, %v1954
        %v1956 = vrot.slane %v1849, %v1955
        %v1957 = vlaneseq
        %v1958 = vshrl.u32 %v1957, 7
        %v1959 = vsub.s32 7, %v1958
        %v1960 = vrot.slane %v1849, %v1959
        %v1963 = vlaneseq
        %v1964 = vshrl.u32 %v1963, 7
        %v1965 = vsub.s32 3, %v1964
        %v1966 = vrot.slane %v1956, %v1965
        %v1967 = vlaneseq
        %v1968 = vshrl.u32 %v1967, 7
        %v1969 = vsub.s32 3, %v1968
        %v1970 = vrot.slane %v1960, %v1969
        %v1971 = vmul.f32 %v1966, %v1945
        %v1972 = vmul.f32 %v1970, %v1946
        %v1973 = vmul.f32 %v1966, %v1947
        %v1974 = vmul.f32 %v1970, %v1948
        %v1975 = vsel %vm1949, %v1945, %v1971
        %v1976 = vsel %vm1950, %v1946, %v1972
        %v1977 = vsel %vm1951, %v1947, %v1973
        %v1978 = vsel %vm1952, %v1948, %v1974
        %1979 = vst [vmem:[#allocation2 + $0x20] sm:$0xff] %v1975
        %1980 = vst [vmem:[#allocation2 + $0x28] sm:$0xff] %v1976
        %1981 = vst [vmem:[#allocation2 + $0x30] sm:$0xff] %v1977
        %1982 = vst [vmem:[#allocation2 + $0x38] sm:$0xff] %v1978
        %v1983 = vld [vmem:[#allocation2] sm:$0xff]
        %v1984 = vld [vmem:[#allocation2 + $0x8] sm:$0xff]
        %v1985 = vld [vmem:[#allocation2 + $0x10] sm:$0xff]
        %v1986 = vld [vmem:[#allocation2 + $0x18] sm:$0xff]
        %s1987 = scalar_lea.vmem [#allocation3], 4096
        %v1988 = vld [vmem:[%s1987] sm:$0xff]
        %v1989 = vld [vmem:[%s1987 + $0x8] sm:$0xff]
        %v1990 = vld [vmem:[%s1987 + $0x10] sm:$0xff]
        %v1991 = vld [vmem:[%s1987 + $0x18] sm:$0xff]
        %v1992 = vld [vmem:[%s1987 + $0x20] sm:$0xff]
        %v1993 = vld [vmem:[%s1987 + $0x28] sm:$0xff]
        %v1994 = vld [vmem:[%s1987 + $0x30] sm:$0xff]
        %v1995 = vld [vmem:[%s1987 + $0x38] sm:$0xff]
        %v1996 = vld [vmem:[%s1987 + $0x40] sm:$0xff]
        %v1997 = vld [vmem:[%s1987 + $0x48] sm:$0xff]
        %v1998 = vld [vmem:[%s1987 + $0x50] sm:$0xff]
        %v1999 = vld [vmem:[%s1987 + $0x58] sm:$0xff]
        %v2000 = vld [vmem:[%s1987 + $0x60] sm:$0xff]
        %v2001 = vld [vmem:[%s1987 + $0x68] sm:$0xff]
        %v2002 = vld [vmem:[%s1987 + $0x70] sm:$0xff]
        %v2003 = vld [vmem:[%s1987 + $0x78] sm:$0xff]
        %v2004 = vld [vmem:[%s1987 + $0x80] sm:$0xff]
        %v2005 = vld [vmem:[%s1987 + $0x88] sm:$0xff]
        %v2006 = vld [vmem:[%s1987 + $0x90] sm:$0xff]
        %v2007 = vld [vmem:[%s1987 + $0x98] sm:$0xff]
        %v2008 = vld [vmem:[%s1987 + $0xa0] sm:$0xff]
        %v2009 = vld [vmem:[%s1987 + $0xa8] sm:$0xff]
        %v2010 = vld [vmem:[%s1987 + $0xb0] sm:$0xff]
        %v2011 = vld [vmem:[%s1987 + $0xb8] sm:$0xff]
        %v2012 = vld [vmem:[%s1987 + $0xc0] sm:$0xff]
        %v2013 = vld [vmem:[%s1987 + $0xc8] sm:$0xff]
        %v2014 = vld [vmem:[%s1987 + $0xd0] sm:$0xff]
        %v2015 = vld [vmem:[%s1987 + $0xd8] sm:$0xff]
        %v2016 = vld [vmem:[%s1987 + $0xe0] sm:$0xff]
        %v2017 = vld [vmem:[%s1987 + $0xe8] sm:$0xff]
        %v2018 = vld [vmem:[%s1987 + $0xf0] sm:$0xff]
        %v2019 = vld [vmem:[%s1987 + $0xf8] sm:$0xff]
        %v2020 = vld [vmem:[%s1987 + $0x100] sm:$0xff]
        %v2021 = vld [vmem:[%s1987 + $0x108] sm:$0xff]
        %v2022 = vld [vmem:[%s1987 + $0x110] sm:$0xff]
        %v2023 = vld [vmem:[%s1987 + $0x118] sm:$0xff]
        %v2024 = vld [vmem:[%s1987 + $0x120] sm:$0xff]
        %v2025 = vld [vmem:[%s1987 + $0x128] sm:$0xff]
        %v2026 = vld [vmem:[%s1987 + $0x130] sm:$0xff]
        %v2027 = vld [vmem:[%s1987 + $0x138] sm:$0xff]
        %v2028 = vld [vmem:[%s1987 + $0x140] sm:$0xff]
        %v2029 = vld [vmem:[%s1987 + $0x148] sm:$0xff]
        %v2030 = vld [vmem:[%s1987 + $0x150] sm:$0xff]
        %v2031 = vld [vmem:[%s1987 + $0x158] sm:$0xff]
        %v2032 = vld [vmem:[%s1987 + $0x160] sm:$0xff]
        %v2033 = vld [vmem:[%s1987 + $0x168] sm:$0xff]
        %v2034 = vld [vmem:[%s1987 + $0x170] sm:$0xff]
        %v2035 = vld [vmem:[%s1987 + $0x178] sm:$0xff]
        %v2036 = vld [vmem:[%s1987 + $0x180] sm:$0xff]
        %v2037 = vld [vmem:[%s1987 + $0x188] sm:$0xff]
        %v2038 = vld [vmem:[%s1987 + $0x190] sm:$0xff]
        %v2039 = vld [vmem:[%s1987 + $0x198] sm:$0xff]
        %v2040 = vld [vmem:[%s1987 + $0x1a0] sm:$0xff]
        %v2041 = vld [vmem:[%s1987 + $0x1a8] sm:$0xff]
        %v2042 = vld [vmem:[%s1987 + $0x1b0] sm:$0xff]
        %v2043 = vld [vmem:[%s1987 + $0x1b8] sm:$0xff]
        %v2044 = vld [vmem:[%s1987 + $0x1c0] sm:$0xff]
        %v2045 = vld [vmem:[%s1987 + $0x1c8] sm:$0xff]
        %v2046 = vld [vmem:[%s1987 + $0x1d0] sm:$0xff]
        %v2047 = vld [vmem:[%s1987 + $0x1d8] sm:$0xff]
        %v2048 = vld [vmem:[%s1987 + $0x1e0] sm:$0xff]
        %v2049 = vld [vmem:[%s1987 + $0x1e8] sm:$0xff]
        %v2050 = vld [vmem:[%s1987 + $0x1f0] sm:$0xff]
        %v2051 = vld [vmem:[%s1987 + $0x1f8] sm:$0xff]
        %v2052 = vld [vmem:[#allocation2 + $0x20] sm:$0xff]
        %v2053 = vld [vmem:[#allocation2 + $0x28] sm:$0xff]
        %v2054 = vld [vmem:[#allocation2 + $0x30] sm:$0xff]
        %v2055 = vld [vmem:[#allocation2 + $0x38] sm:$0xff]
        %s2056 = scalar_lea.vmem [#allocation3], 4608
        %v2057 = vld [vmem:[%s2056] sm:$0xff]
        %v2058 = vld [vmem:[%s2056 + $0x8] sm:$0xff]
        %v2059 = vld [vmem:[%s2056 + $0x10] sm:$0xff]
        %v2060 = vld [vmem:[%s2056 + $0x18] sm:$0xff]
        %v2061 = vld [vmem:[%s2056 + $0x20] sm:$0xff]
        %v2062 = vld [vmem:[%s2056 + $0x28] sm:$0xff]
        %v2063 = vld [vmem:[%s2056 + $0x30] sm:$0xff]
        %v2064 = vld [vmem:[%s2056 + $0x38] sm:$0xff]
        %v2065 = vld [vmem:[%s2056 + $0x40] sm:$0xff]
        %v2066 = vld [vmem:[%s2056 + $0x48] sm:$0xff]
        %v2067 = vld [vmem:[%s2056 + $0x50] sm:$0xff]
        %v2068 = vld [vmem:[%s2056 + $0x58] sm:$0xff]
        %v2069 = vld [vmem:[%s2056 + $0x60] sm:$0xff]
        %v2070 = vld [vmem:[%s2056 + $0x68] sm:$0xff]
        %v2071 = vld [vmem:[%s2056 + $0x70] sm:$0xff]
        %v2072 = vld [vmem:[%s2056 + $0x78] sm:$0xff]
        %v2073 = vld [vmem:[%s2056 + $0x80] sm:$0xff]
        %v2074 = vld [vmem:[%s2056 + $0x88] sm:$0xff]
        %v2075 = vld [vmem:[%s2056 + $0x90] sm:$0xff]
        %v2076 = vld [vmem:[%s2056 + $0x98] sm:$0xff]
        %v2077 = vld [vmem:[%s2056 + $0xa0] sm:$0xff]
        %v2078 = vld [vmem:[%s2056 + $0xa8] sm:$0xff]
        %v2079 = vld [vmem:[%s2056 + $0xb0] sm:$0xff]
        %v2080 = vld [vmem:[%s2056 + $0xb8] sm:$0xff]
        %v2081 = vld [vmem:[%s2056 + $0xc0] sm:$0xff]
        %v2082 = vld [vmem:[%s2056 + $0xc8] sm:$0xff]
        %v2083 = vld [vmem:[%s2056 + $0xd0] sm:$0xff]
        %v2084 = vld [vmem:[%s2056 + $0xd8] sm:$0xff]
        %v2085 = vld [vmem:[%s2056 + $0xe0] sm:$0xff]
        %v2086 = vld [vmem:[%s2056 + $0xe8] sm:$0xff]
        %v2087 = vld [vmem:[%s2056 + $0xf0] sm:$0xff]
        %v2088 = vld [vmem:[%s2056 + $0xf8] sm:$0xff]
        %v2089 = vld [vmem:[%s2056 + $0x100] sm:$0xff]
        %v2090 = vld [vmem:[%s2056 + $0x108] sm:$0xff]
        %v2091 = vld [vmem:[%s2056 + $0x110] sm:$0xff]
        %v2092 = vld [vmem:[%s2056 + $0x118] sm:$0xff]
        %v2093 = vld [vmem:[%s2056 + $0x120] sm:$0xff]
        %v2094 = vld [vmem:[%s2056 + $0x128] sm:$0xff]
        %v2095 = vld [vmem:[%s2056 + $0x130] sm:$0xff]
        %v2096 = vld [vmem:[%s2056 + $0x138] sm:$0xff]
        %v2097 = vld [vmem:[%s2056 + $0x140] sm:$0xff]
        %v2098 = vld [vmem:[%s2056 + $0x148] sm:$0xff]
        %v2099 = vld [vmem:[%s2056 + $0x150] sm:$0xff]
        %v2100 = vld [vmem:[%s2056 + $0x158] sm:$0xff]
        %v2101 = vld [vmem:[%s2056 + $0x160] sm:$0xff]
        %v2102 = vld [vmem:[%s2056 + $0x168] sm:$0xff]
        %v2103 = vld [vmem:[%s2056 + $0x170] sm:$0xff]
        %v2104 = vld [vmem:[%s2056 + $0x178] sm:$0xff]
        %v2105 = vld [vmem:[%s2056 + $0x180] sm:$0xff]
        %v2106 = vld [vmem:[%s2056 + $0x188] sm:$0xff]
        %v2107 = vld [vmem:[%s2056 + $0x190] sm:$0xff]
        %v2108 = vld [vmem:[%s2056 + $0x198] sm:$0xff]
        %v2109 = vld [vmem:[%s2056 + $0x1a0] sm:$0xff]
        %v2110 = vld [vmem:[%s2056 + $0x1a8] sm:$0xff]
        %v2111 = vld [vmem:[%s2056 + $0x1b0] sm:$0xff]
        %v2112 = vld [vmem:[%s2056 + $0x1b8] sm:$0xff]
        %v2113 = vld [vmem:[%s2056 + $0x1c0] sm:$0xff]
        %v2114 = vld [vmem:[%s2056 + $0x1c8] sm:$0xff]
        %v2115 = vld [vmem:[%s2056 + $0x1d0] sm:$0xff]
        %v2116 = vld [vmem:[%s2056 + $0x1d8] sm:$0xff]
        %v2117 = vld [vmem:[%s2056 + $0x1e0] sm:$0xff]
        %v2118 = vld [vmem:[%s2056 + $0x1e8] sm:$0xff]
        %v2119 = vld [vmem:[%s2056 + $0x1f0] sm:$0xff]
        %v2120 = vld [vmem:[%s2056 + $0x1f8] sm:$0xff]
        %2121 = vmatprep.subr.mxu0 %v2058
        %2122 = vmatpush1.msra.mxu0 %v2057
        %2123 = vmatprep.subr.mxu0 %v2060
        %2124 = vmatpush1.msra.mxu0 %v2059
        %2125 = vmatprep.subr.mxu0 %v2062
        %2126 = vmatpush1.msra.mxu0 %v2061
        %2127 = vmatprep.subr.mxu0 %v2064
        %2128 = vmatpush1.msra.mxu0 %v2063
        %2129 = vmatprep.subr.mxu0 %v2066
        %2130 = vmatpush1.msra.mxu0 %v2065
        %2131 = vmatprep.subr.mxu0 %v2068
        %2132 = vmatpush1.msra.mxu0 %v2067
        %2133 = vmatprep.subr.mxu0 %v2070
        %2134 = vmatpush1.msra.mxu0 %v2069
        %2135 = vmatprep.subr.mxu0 %v2072
        %2136 = vmatpush1.msra.mxu0 %v2071
        %2137 = vmatprep.subr.mxu0 %v2074
        %2138 = vmatpush1.msra.mxu0 %v2073
        %2139 = vmatprep.subr.mxu0 %v2076
        %2140 = vmatpush1.msra.mxu0 %v2075
        %2141 = vmatprep.subr.mxu0 %v2078
        %2142 = vmatpush1.msra.mxu0 %v2077
        %2143 = vmatprep.subr.mxu0 %v2080
        %2144 = vmatpush1.msra.mxu0 %v2079
        %2145 = vmatprep.subr.mxu0 %v2082
        %2146 = vmatpush1.msra.mxu0 %v2081
        %2147 = vmatprep.subr.mxu0 %v2084
        %2148 = vmatpush1.msra.mxu0 %v2083
        %2149 = vmatprep.subr.mxu0 %v2086
        %2150 = vmatpush1.msra.mxu0 %v2085
        %2151 = vmatprep.subr.mxu0 %v2088
        %2152 = vmatpush1.msra.mxu0 %v2087
        %2153 = vmatprep.subr.mxu0 %v2090
        %2154 = vmatpush1.msra.mxu0 %v2089
        %2155 = vmatprep.subr.mxu0 %v2092
        %2156 = vmatpush1.msra.mxu0 %v2091
        %2157 = vmatprep.subr.mxu0 %v2094
        %2158 = vmatpush1.msra.mxu0 %v2093
        %2159 = vmatprep.subr.mxu0 %v2096
        %2160 = vmatpush1.msra.mxu0 %v2095
        %2161 = vmatprep.subr.mxu0 %v2098
        %2162 = vmatpush1.msra.mxu0 %v2097
        %2163 = vmatprep.subr.mxu0 %v2100
        %2164 = vmatpush1.msra.mxu0 %v2099
        %2165 = vmatprep.subr.mxu0 %v2102
        %2166 = vmatpush1.msra.mxu0 %v2101
        %2167 = vmatprep.subr.mxu0 %v2104
        %2168 = vmatpush1.msra.mxu0 %v2103
        %2169 = vmatprep.subr.mxu0 %v2106
        %2170 = vmatpush1.msra.mxu0 %v2105
        %2171 = vmatprep.subr.mxu0 %v2108
        %2172 = vmatpush1.msra.mxu0 %v2107
        %2173 = vmatprep.subr.mxu0 %v2110
        %2174 = vmatpush1.msra.mxu0 %v2109
        %2175 = vmatprep.subr.mxu0 %v2112
        %2176 = vmatpush1.msra.mxu0 %v2111
        %2177 = vmatprep.subr.mxu0 %v2114
        %2178 = vmatpush1.msra.mxu0 %v2113
        %2179 = vmatprep.subr.mxu0 %v2116
        %2180 = vmatpush1.msra.mxu0 %v2115
        %2181 = vmatprep.subr.mxu0 %v2118
        %2182 = vmatpush1.msra.mxu0 %v2117
        %2183 = vmatprep.subr.mxu0 %v2120
        %2184 = vmatpush1.msra.mxu0 %v2119
        %2185 = vmatprep.mubr.f32.mxu0 %v2053
        %2186 = vmatmul.mubr.f32.gmra.mrb[0].mxu0 %v2052
        %v2187 = vpop.f32.mrb[0].mxu0
        %v2188 = vadd.f32 0.0, %v2187
        %v2189 = vpop.f32.mrb[0].mxu0
        %v2190 = vadd.f32 0.0, %v2189
        %2191 = vmatprep.mubr.f32.mxu0 %v2055
        %2192 = vmatmul.mubr.f32.gmra.mrb[0].mxu0 %v2054
        %v2193 = vpop.f32.mrb[0].mxu0
        %v2194 = vadd.f32 0.0, %v2193
        %v2195 = vpop.f32.mrb[0].mxu0
        %v2196 = vadd.f32 0.0, %v2195
        %2197 = vdwg.mxu0
        %2198 = vmatprep.subr.mxu0 %v1989
        %2199 = vmatpush1.msra.mxu0 %v1988
        %2200 = vmatprep.subr.mxu0 %v1991
        %2201 = vmatpush1.msra.mxu0 %v1990
        %2202 = vmatprep.subr.mxu0 %v1993
        %2203 = vmatpush1.msra.mxu0 %v1992
        %2204 = vmatprep.subr.mxu0 %v1995
        %2205 = vmatpush1.msra.mxu0 %v1994
        %2206 = vmatprep.subr.mxu0 %v1997
        %2207 = vmatpush1.msra.mxu0 %v1996
        %2208 = vmatprep.subr.mxu0 %v1999
        %2209 = vmatpush1.msra.mxu0 %v1998
        %2210 = vmatprep.subr.mxu0 %v2001
        %2211 = vmatpush1.msra.mxu0 %v2000
        %2212 = vmatprep.subr.mxu0 %v2003
        %2213 = vmatpush1.msra.mxu0 %v2002
        %2214 = vmatprep.subr.mxu0 %v2005
        %2215 = vmatpush1.msra.mxu0 %v2004
        %2216 = vmatprep.subr.mxu0 %v2007
        %2217 = vmatpush1.msra.mxu0 %v2006
        %2218 = vmatprep.subr.mxu0 %v2009
        %2219 = vmatpush1.msra.mxu0 %v2008
        %2220 = vmatprep.subr.mxu0 %v2011
        %2221 = vmatpush1.msra.mxu0 %v2010
        %2222 = vmatprep.subr.mxu0 %v2013
        %2223 = vmatpush1.msra.mxu0 %v2012
        %2224 = vmatprep.subr.mxu0 %v2015
        %2225 = vmatpush1.msra.mxu0 %v2014
        %2226 = vmatprep.subr.mxu0 %v2017
        %2227 = vmatpush1.msra.mxu0 %v2016
        %2228 = vmatprep.subr.mxu0 %v2019
        %2229 = vmatpush1.msra.mxu0 %v2018
        %2230 = vmatprep.subr.mxu0 %v2021
        %2231 = vmatpush1.msra.mxu0 %v2020
        %2232 = vmatprep.subr.mxu0 %v2023
        %2233 = vmatpush1.msra.mxu0 %v2022
        %2234 = vmatprep.subr.mxu0 %v2025
        %2235 = vmatpush1.msra.mxu0 %v2024
        %2236 = vmatprep.subr.mxu0 %v2027
        %2237 = vmatpush1.msra.mxu0 %v2026
        %2238 = vmatprep.subr.mxu0 %v2029
        %2239 = vmatpush1.msra.mxu0 %v2028
        %2240 = vmatprep.subr.mxu0 %v2031
        %2241 = vmatpush1.msra.mxu0 %v2030
        %2242 = vmatprep.subr.mxu0 %v2033
        %2243 = vmatpush1.msra.mxu0 %v2032
        %2244 = vmatprep.subr.mxu0 %v2035
        %2245 = vmatpush1.msra.mxu0 %v2034
        %2246 = vmatprep.subr.mxu0 %v2037
        %2247 = vmatpush1.msra.mxu0 %v2036
        %2248 = vmatprep.subr.mxu0 %v2039
        %2249 = vmatpush1.msra.mxu0 %v2038
        %2250 = vmatprep.subr.mxu0 %v2041
        %2251 = vmatpush1.msra.mxu0 %v2040
        %2252 = vmatprep.subr.mxu0 %v2043
        %2253 = vmatpush1.msra.mxu0 %v2042
        %2254 = vmatprep.subr.mxu0 %v2045
        %2255 = vmatpush1.msra.mxu0 %v2044
        %2256 = vmatprep.subr.mxu0 %v2047
        %2257 = vmatpush1.msra.mxu0 %v2046
        %2258 = vmatprep.subr.mxu0 %v2049
        %2259 = vmatpush1.msra.mxu0 %v2048
        %2260 = vmatprep.subr.mxu0 %v2051
        %2261 = vmatpush1.msra.mxu0 %v2050
        %2262 = vmatprep.mubr.f32.mxu0 %v1984
        %2263 = vmatmul.mubr.f32.gmra.mrb[0].mxu0 %v1983
        %v2264 = vpop.f32.mrb[0].mxu0
        %v2265 = vadd.f32 %v2188, %v2264
        %v2266 = vpop.f32.mrb[0].mxu0
        %v2267 = vadd.f32 %v2190, %v2266
        %2268 = vmatprep.mubr.f32.mxu0 %v1986
        %2269 = vmatmul.mubr.f32.gmra.mrb[0].mxu0 %v1985
        %v2270 = vpop.f32.mrb[0].mxu0
        %v2271 = vadd.f32 %v2194, %v2270
        %v2272 = vpop.f32.mrb[0].mxu0
        %v2273 = vadd.f32 %v2196, %v2272
        %2274 = vdwg.mxu0
        %s2275 = scalar_lea.vmem [#allocation5], 32
        %v2276 = vld [vmem:[%s2275] sm:$0xff]
        %v2278 = vlaneseq
        %v2279 = vshrl.u32 %v2278, 7
        %v2280 = vsub.s32 0, %v2279
        %v2281 = vrot.slane %v2276, %v2280
        %v2282 = vlaneseq
        %v2283 = vshrl.u32 %v2282, 7
        %v2284 = vsub.s32 4, %v2283
        %v2285 = vrot.slane %v2276, %v2284
        %v2288 = vlaneseq
        %v2289 = vshrl.u32 %v2288, 7
        %v2290 = vsub.s32 0, %v2289
        %v2291 = vrot.slane %v2281, %v2290
        %v2292 = vlaneseq
        %v2293 = vshrl.u32 %v2292, 7
        %v2294 = vsub.s32 0, %v2293
        %v2295 = vrot.slane %v2285, %v2294
        %v2296 = vadd.f32 %v2265, %v2291
        %v2297 = vadd.f32 %v2267, %v2295
        %v2298 = vadd.f32 %v2271, %v2291
        %v2299 = vadd.f32 %v2273, %v2295
        %v2300 = vadd.f32 %v2296, %v2297
        %2301 = vadd.xlane.f32.xlu0 %v2300
        %v2302 = vpop.xlane.xlu0 %2301
        %v2303 = vadd.f32 %v2298, %v2299
        %2304 = vadd.xlane.f32.xlu0 %v2303
        %v2305 = vpop.xlane.xlu0 %2304
        %v2306 = vmul.f32 %v2302, %v555
        %v2307 = vmul.f32 %v2305, %v555
        %v2308 = vsub.f32 %v2296, %v2306
        %v2309 = vsub.f32 %v2297, %v2306
        %v2310 = vsub.f32 %v2298, %v2307
        %v2311 = vsub.f32 %v2299, %v2307
        %v2312 = vmul.f32 %v2308, %v2308
        %v2313 = vmul.f32 %v2309, %v2309
        %v2314 = vmul.f32 %v2310, %v2310
        %v2315 = vmul.f32 %v2311, %v2311
        %v2316 = vadd.f32 %v2312, %v2313
        %2317 = vadd.xlane.f32.xlu0 %v2316
        %v2318 = vpop.xlane.xlu0 %2317
        %v2319 = vadd.f32 %v2314, %v2315
        %2320 = vadd.xlane.f32.xlu0 %v2319
        %v2321 = vpop.xlane.xlu0 %2320
        %v2322 = vmul.f32 %v2318, %v555
        %v2323 = vmul.f32 %v2321, %v555
        %v2324 = vadd.f32 %v2322, 1e-05
        %v2325 = vadd.f32 %v2323, 1e-05
        %v2326 = vrsqrt.pop %v2324
        %v2327 = vrsqrt.pop %v2325
        %v2328 = vmul.f32 %v2308, %v2326
        %v2329 = vmul.f32 %v2309, %v2326
        %v2330 = vmul.f32 %v2310, %v2327
        %v2331 = vmul.f32 %v2311, %v2327
        %v2332 = vlaneseq
        %v2333 = vshrl.u32 %v2332, 7
        %v2334 = vsub.s32 1, %v2333
        %v2335 = vrot.slane %v2276, %v2334
        %v2336 = vlaneseq
        %v2337 = vshrl.u32 %v2336, 7
        %v2338 = vsub.s32 5, %v2337
        %v2339 = vrot.slane %v2276, %v2338
        %v2342 = vlaneseq
        %v2343 = vshrl.u32 %v2342, 7
        %v2344 = vsub.s32 1, %v2343
        %v2345 = vrot.slane %v2335, %v2344
        %v2346 = vlaneseq
        %v2347 = vshrl.u32 %v2346, 7
        %v2348 = vsub.s32 1, %v2347
        %v2349 = vrot.slane %v2339, %v2348
        %v2350 = vmul.f32 %v2328, %v2345
        %v2351 = vmul.f32 %v2329, %v2349
        %v2352 = vmul.f32 %v2330, %v2345
        %v2353 = vmul.f32 %v2331, %v2349
        %v2354 = vlaneseq
        %v2355 = vshrl.u32 %v2354, 7
        %v2356 = vsub.s32 2, %v2355
        %v2357 = vrot.slane %v2276, %v2356
        %v2358 = vlaneseq
        %v2359 = vshrl.u32 %v2358, 7
        %v2360 = vsub.s32 6, %v2359
        %v2361 = vrot.slane %v2276, %v2360
        %v2364 = vlaneseq
        %v2365 = vshrl.u32 %v2364, 7
        %v2366 = vsub.s32 2, %v2365
        %v2367 = vrot.slane %v2357, %v2366
        %v2368 = vlaneseq
        %v2369 = vshrl.u32 %v2368, 7
        %v2370 = vsub.s32 2, %v2369
        %v2371 = vrot.slane %v2361, %v2370
        %v2372 = vadd.f32 %v2350, %v2367
        %v2373 = vadd.f32 %v2351, %v2371
        %v2374 = vadd.f32 %v2352, %v2367
        %v2375 = vadd.f32 %v2353, %v2371
        %vm2376 = vcmp.gt.f32.partialorder %v2372, 0.0
        %vm2377 = vcmp.gt.f32.partialorder %v2373, 0.0
        %vm2378 = vcmp.gt.f32.partialorder %v2374, 0.0
        %vm2379 = vcmp.gt.f32.partialorder %v2375, 0.0
        %v2380 = vlaneseq
        %v2381 = vshrl.u32 %v2380, 7
        %v2382 = vsub.s32 3, %v2381
        %v2383 = vrot.slane %v2276, %v2382
        %v2384 = vlaneseq
        %v2385 = vshrl.u32 %v2384, 7
        %v2386 = vsub.s32 7, %v2385
        %v2387 = vrot.slane %v2276, %v2386
        %v2390 = vlaneseq
        %v2391 = vshrl.u32 %v2390, 7
        %v2392 = vsub.s32 3, %v2391
        %v2393 = vrot.slane %v2383, %v2392
        %v2394 = vlaneseq
        %v2395 = vshrl.u32 %v2394, 7
        %v2396 = vsub.s32 3, %v2395
        %v2397 = vrot.slane %v2387, %v2396
        %v2398 = vmul.f32 %v2393, %v2372
        %v2399 = vmul.f32 %v2397, %v2373
        %v2400 = vmul.f32 %v2393, %v2374
        %v2401 = vmul.f32 %v2397, %v2375
        %v2402 = vsel %vm2376, %v2372, %v2398
        %v2403 = vsel %vm2377, %v2373, %v2399
        %v2404 = vsel %vm2378, %v2374, %v2400
        %v2405 = vsel %vm2379, %v2375, %v2401
        %2406 = vst [vmem:[#allocation2 + $0x20] sm:$0xff] %v2402
        %2407 = vst [vmem:[#allocation2 + $0x28] sm:$0xff] %v2403
        %2408 = vst [vmem:[#allocation2 + $0x30] sm:$0xff] %v2404
        %2409 = vst [vmem:[#allocation2 + $0x38] sm:$0xff] %v2405
        %v2410 = vld [vmem:[#allocation2 + $0x20] sm:$0xff]
        %v2411 = vld [vmem:[#allocation2 + $0x28] sm:$0xff]
        %v2412 = vld [vmem:[#allocation2 + $0x30] sm:$0xff]
        %v2413 = vld [vmem:[#allocation2 + $0x38] sm:$0xff]
        %2414 = vst [vmem:[%s200] sm:$0xff] %v2410
        %2415 = vst [vmem:[%s200 + $0x8] sm:$0xff] %v2411
        %2416 = vst [vmem:[%s200 + $0x10] sm:$0xff] %v2412
        %2417 = vst [vmem:[%s200 + $0x18] sm:$0xff] %v2413
        %p2418 = scmp.lt.s32.totalorder %s16, 1
        %s2419 = scalar_select %p2418, %s16, 1
        %s2420 = smul.addr %s2419, 4
        %s2421 = smul.addr %s2420, 8
        %s2422 = scalar_lea.vmem %s3, %s2421
        // Predicated region
        $region41: #{dense_block.1} parent=31 // pred_check
          %p2423 = pneg %p102
        $region42: #{dense_block.1} parent=31 // pred_check_branch
          %2425 = sbr.rel (%p2423) target = $region44
        $region43: #{dense_block.1} parent=31 // pred_region
          _
        $region44: #{dense_block.1} parent=31 // pred_fallthru
          _
      $region32: #{dense_block.1} parent=5 // pred_fallthru
        _
      %p2426 = scmp.le.s32.totalorder 2, %s11
      // Predicated region
      $region45: #{dense_block.1} parent=5 // pred_check
        %p2427 = pneg %p2426
      $region46: #{dense_block.1} parent=5 // pred_check_branch
        %2429 = sbr.rel (%p2427) target = $region48
      $region47: #{dense_block.1} parent=5 // pred_region
        %s2430 = ssub.s32 %s11, 2
        // Predicated region
        $region49: #{dense_block.1} parent=47 // pred_check
          %p2431 = pneg %p108
        $region50: #{dense_block.1} parent=47 // pred_check_branch
          %2433 = sbr.rel (%p2431) target = $region52
        $region51: #{dense_block.1} parent=47 // pred_region
          %p2434 = scmp.lt.s32.totalorder %s17, 1
          %s2435 = scalar_select %p2434, %s17, 1
          %s2436 = smul.addr %s2435, 4
          %s2437 = smul.addr %s2436, 8
          %s2438 = scalar_lea.vmem %s3, %s2437
        $region52: #{dense_block.1} parent=47 // pred_fallthru
          _
      $region48: #{dense_block.1} parent=5 // pred_fallthru
        _
    $region6: #{dense_block.1} parent=1 // loop_footer
      %s15 = sadd.s32 1, %s11
    $region7: #{dense_block.1} parent=1 // loop_footer_branch
      %10 = sbr.rel target = $region3
    $region8: #{dense_block.1} parent=1 // loop_exit
      _
    %2439 = vsyncpa [#allocation4], 1
    %s2440 = scalar_lea.sflag [#allocation4], 1
    %2441 = vsyncpa %s2440, 1
    %2442 = vsyncpa [#allocation6], 1

</llo_original>
